<compile_context>
chip_gen: v7x
topology: tpu7x:2x2x1
jax: 0.10.0
libtpu: 0.0.40
codegen_flags: <defaults>
</compile_context>

<pallas_src>
import jax
import jax.numpy as jnp
import numpy as np
from jax import lax
from jax.experimental import pallas as pl
from jax.experimental.pallas import tpu as pltpu


def _grid_generator_kernel(x_ref, w_ref, out_ref):
    """Single fused matmul.

    x_ref:   (tm, 2F)   flattened fiducial points (x0,y0,x1,y1,...) per row
    w_ref:   (2F, 2n)   interleaved fused weight (static buffer)
    out_ref: (tm, 2n)   row-major (n, 2) grid per row  -> reshape (H, W, 2) free
    """
    out_ref[...] = jnp.dot(
        x_ref[...], w_ref[...],
        preferred_element_type=jnp.float32,
        precision=lax.Precision.HIGHEST,
    ).astype(out_ref.dtype)


class GridGenerator:
    """JAX/Pallas port of the RARE GridGenerator (produces P_prime = P_hat @ T)."""

    def __init__(self, F, output_size, eps=1e-06):
        self.eps = eps
        self.output_height, self.output_width = output_size
        self.F = F
        self.num_points = self.output_height * self.output_width

        # --- static buffers, built with numpy exactly like the PyTorch module ---
        C = self._build_C(F)                                       # (F, 2)
        P = self._build_P(self.output_width, self.output_height)   # (n, 2)
        inv_delta_C = self._build_inv_delta_C(F, C)                 # (F+3, F+3) f64
        P_hat = self._build_P_hat(F, C, P)                          # (n, F+3)   f64

        # Kept in original orientation/precision for reference/inspection parity.
        self.inv_delta_C = jnp.asarray(inv_delta_C.astype(np.float32))
        self.P_hat = jnp.asarray(P_hat.astype(np.float32))

        # Fused + interleaved kernel weight:
        #   A = P_hat @ inv_delta_C[:, :F]                 (n, F)   exact fusion
        #   W[2f+c, 2j+c'] = A[j, f] * (c == c')           (2F, 2n)
        # so that  x.reshape(B, 2F) @ W == P_prime.reshape(B, 2n)   row-major.
        n = self.num_points
        A = (P_hat @ inv_delta_C[:, :F]).astype(np.float32)         # (n, F)
        W = np.einsum('jf,cd->fcjd', A, np.eye(2, dtype=np.float32))
        self.W = jnp.asarray(W.reshape(2 * F, 2 * n).astype(np.float32))

    # ------------------------------------------------------------------ #
    # numpy buffer builders (verbatim translation of the PyTorch module)  #
    # ------------------------------------------------------------------ #
    def _build_C(self, F):
        ctrl_pts_x = np.linspace(-1.0, 1.0, int(F / 2))
        ctrl_pts_y_top = -1 * np.ones(int(F / 2))
        ctrl_pts_y_bottom = np.ones(int(F / 2))
        ctrl_pts_top = np.stack([ctrl_pts_x, ctrl_pts_y_top], axis=1)
        ctrl_pts_bottom = np.stack([ctrl_pts_x, ctrl_pts_y_bottom], axis=1)
        return np.concatenate([ctrl_pts_top, ctrl_pts_bottom], axis=0)

    def _build_inv_delta_C(self, F, C):
        hat_C = np.zeros((F, F), dtype=float)
        for i in range(0, F):
            for j in range(i, F):
                r = np.linalg.norm(C[i] - C[j])
                hat_C[i, j] = r
                hat_C[j, i] = r
        np.fill_diagonal(hat_C, 1)
        hat_C = hat_C ** 2 * np.log(hat_C)
        delta_C = np.concatenate([
            np.concatenate([np.ones((F, 1)), C, hat_C], axis=1),
            np.concatenate([np.zeros((2, 3)), np.transpose(C)], axis=1),
            np.concatenate([np.zeros((1, 3)), np.ones((1, F))], axis=1),
        ], axis=0)
        return np.linalg.inv(delta_C)

    def _build_P(self, I_r_width, I_r_height):
        I_r_grid_x = (np.arange(-I_r_width, I_r_width, 2) + 1.0) / I_r_width
        I_r_grid_y = (np.arange(-I_r_height, I_r_height, 2) + 1.0) / I_r_height
        P = np.stack(np.meshgrid(I_r_grid_x, I_r_grid_y), axis=2)
        return P.reshape([-1, 2])

    def _build_P_hat(self, F, C, P):
        n = P.shape[0]
        P_tile = np.tile(np.expand_dims(P, axis=1), (1, F, 1))
        C_tile = np.expand_dims(C, axis=0)
        P_diff = P_tile - C_tile
        rbf_norm = np.linalg.norm(P_diff, ord=2, axis=2, keepdims=False)
        rbf = np.multiply(np.square(rbf_norm), np.log(rbf_norm + self.eps))
        return np.concatenate([np.ones((n, 1)), P, rbf], axis=1)

    # ------------------------------------------------------------------ #
    # Pallas forward                                                      #
    # ------------------------------------------------------------------ #
    def _p_prime_flat(self, x_flat):
        """x_flat: (B, 2F)  ->  (B, 2n)   (row-major (n,2) grid per batch row)."""
        B = x_flat.shape[0]
        Kdim = 2 * self.F
        Ndim = 2 * self.num_points

        # Single grid step for small B; tile rows at 256 only for large batches
        # (keeps v7x 2-TC "parallel" sharding meaningful in that regime).
        tm = B if B <= 256 else 256
        grid = (pl.cdiv(B, tm),)

        flops = 2 * B * Kdim * Ndim
        bytes_accessed = 4 * (B * Kdim + Kdim * Ndim + B * Ndim)

        return pl.pallas_call(
            _grid_generator_kernel,
            out_shape=jax.ShapeDtypeStruct((B, Ndim), jnp.float32),
            grid_spec=pltpu.PrefetchScalarGridSpec(
                num_scalar_prefetch=0,
                grid=grid,
                in_specs=[
                    pl.BlockSpec((tm, Kdim), lambda i: (i, 0)),   # flattened C'
                    pl.BlockSpec((Kdim, Ndim), lambda i: (0, 0)),  # static fused weight
                ],
                out_specs=pl.BlockSpec((tm, Ndim), lambda i: (i, 0)),
            ),
            compiler_params=pltpu.CompilerParams(
                dimension_semantics=("parallel",),
            ),
            cost_estimate=pl.CostEstimate(
                flops=flops, transcendentals=0, bytes_accessed=bytes_accessed),
        )(x_flat, self.W)

    def build_P_prime(self, batch_C_prime):
        """batch_C_prime: (B, F, 2) -> (B, n, 2), matching the PyTorch method."""
        B = batch_C_prime.shape[0]
        x_flat = jnp.reshape(batch_C_prime.astype(jnp.float32), (B, 2 * self.F))
        out_flat = self._p_prime_flat(x_flat)                  # (B, 2n)
        return jnp.reshape(out_flat, (B, self.num_points, 2))  # free reshape

    def __call__(self, x):
        x = jnp.asarray(x, jnp.float32)
        batch_size = x.shape[0]
        batch_C_prime = x.reshape(batch_size, self.F, 2)
        p_prime = self.build_P_prime(batch_C_prime)
        return p_prime.reshape(
            batch_size, self.output_height, self.output_width, 2)


if __name__ == "__main__":
    F_ = 20          # number of fiducial points (standard RARE setting)
    H, W = 16, 32    # small rectified-image size -> n = H*W = 512, 2n = 1024
    B = 2

    gen = GridGenerator(F_, (H, W))

    key = jax.random.PRNGKey(0)
    x = jax.random.uniform(key, (B, F_, 2), dtype=jnp.float32,
                           minval=-1.0, maxval=1.0)

    out = gen(x)
    out = jax.block_until_ready(out)
    assert out.shape == (B, H, W, 2), out.shape

    # Pure numpy reference: same math as the PyTorch module (fp32 buffers,
    # unfused two-matmul path).
    x_np = np.asarray(x, np.float32).reshape(B, F_, 2)
    inv_dC = np.asarray(gen.inv_delta_C, np.float32)
    P_hat = np.asarray(gen.P_hat, np.float32)
    c_with_zeros = np.concatenate([x_np, np.zeros((B, 3, 2), np.float32)], axis=1)
    T_ref = np.matmul(inv_dC[None], c_with_zeros)              # (B, F+3, 2)
    ref = np.matmul(P_hat[None], T_ref).reshape(B, H, W, 2)    # (B, H, W, 2)

    max_err = float(np.max(np.abs(np.asarray(out) - ref)))
    assert np.allclose(np.asarray(out), ref, rtol=1e-4, atol=1e-4), max_err

    print("KERNEL_OK")
</pallas_src>

<mosaic_0001>
module attributes {stable_mosaic.version = 11 : i64} {
  func.func @_grid_generator_kernel(%arg0: i32, %arg1: memref<2x40xf32, #tpu.memory_space<vmem>>, %arg2: memref<40x1024xf32, #tpu.memory_space<vmem>>, %arg3: memref<2x1024xf32, #tpu.memory_space<vmem>>) attributes {dimension_semantics = [#tpu.dimension_semantics<parallel>], iteration_bounds = array<i64: 1>, scalar_prefetch = 0 : i64, scratch_operands = 0 : i64, tpu.core_type = #tpu.core_type<tc>, window_params = [{transform_indices = @transform_0, window_bounds = array<i64: 2, 40>}, {pipeline_mode = #tpu.pipeline_mode<synchronous>, transform_indices = @transform_1, window_bounds = array<i64: 40, 1024>}, {transform_indices = @transform_2, window_bounds = array<i64: 2, 1024>}]} {
    %c0 = arith.constant 0 : index
    %c0_0 = arith.constant 0 : index
    %0 = vector.load %arg1[%c0, %c0_0] : memref<2x40xf32, #tpu.memory_space<vmem>>, vector<2x40xf32>
    %c0_1 = arith.constant 0 : index
    %c0_2 = arith.constant 0 : index
    %1 = vector.load %arg2[%c0_1, %c0_2] : memref<40x1024xf32, #tpu.memory_space<vmem>>, vector<40x1024xf32>
    %cst = arith.constant dense<0.000000e+00> : vector<2x1024xf32>
    %2 = tpu.matmul %0, %1, %cst {dimension_numbers = #tpu.dot_dimension_numbers<[1], [0], [0], [1], [0, 0, 1, 1], [], []>, precision = #tpu.contract_precision<fp32>} : vector<2x40xf32>, vector<40x1024xf32>, vector<2x1024xf32> -> vector<2x1024xf32>
    %c0_3 = arith.constant 0 : index
    %c0_4 = arith.constant 0 : index
    %3 = vector.load %arg3[%c0_3, %c0_4] : memref<2x1024xf32, #tpu.memory_space<vmem>>, vector<2x1024xf32>
    tpu.vector_store %arg3[%c0_3, %c0_4], %2 {strides = array<i32>} : memref<2x1024xf32, #tpu.memory_space<vmem>>, vector<2x1024xf32>,
    return
  }
  func.func @transform_0(%arg0: i32) -> (i32, i32) {
    %c0_i32 = arith.constant 0 : i32
    %c0_i32_0 = arith.constant 0 : i32
    return %arg0, %c0_i32 : i32, i32
  }
  func.func @transform_1(%arg0: i32) -> (i32, i32) {
    %c0_i32 = arith.constant 0 : i32
    %c0_i32_0 = arith.constant 0 : i32
    %c0_i32_1 = arith.constant 0 : i32
    return %c0_i32, %c0_i32_0 : i32, i32
  }
  func.func @transform_2(%arg0: i32) -> (i32, i32) {
    %c0_i32 = arith.constant 0 : i32
    %c0_i32_0 = arith.constant 0 : i32
    return %arg0, %c0_i32 : i32, i32
  }
}

</mosaic_0001>

<llo_original>
// kernel: tpu_custom_call.1
$region0: #{tpu_custom_call.1}
  #allocation0 [shape = 'u32[]', space=smem, size = 0x4, offset = 0x4, fixed_abs, tag = 'smem constant byte address 0x4 - core index']
  #allocation1 [shape = 'u32[144,128]{1,0:T(1,128)}', space=vmem, size = 0x12000, scoped, tag = 'internal scratch']
  %s0 = inlined_call_operand.hbm [shape: f32[2,40], index: 0, kind: input, shape index: {}]
  %s1 = inlined_call_operand.hbm [shape: f32[40,1024], index: 1, kind: input, shape index: {}]
  %s2 = inlined_call_operand.hbm [shape: f32[2,1024], index: 2, kind: output, shape index: {}]
  %s3 = sld [smem:[#allocation0]]
  $region26: #{tpu_custom_call.1} parent=0
    _
  %s5 = ssub.s32 1, %s3
  %s6 = scalar_select 0, %s5, %s3
  $region1: #{tpu_custom_call.1} parent=0
    #allocation2 [shape = 'u8[1024]{0}', space=vmem, size = 0x400, scoped, tag = 'input window, operand 0, single buffered']
    #allocation3 [shape = 's32[1]{0}', space=sflag, size = 0x4, scoped, tag = 'scoped memory for tpu_custom_call.1']
    #allocation4 [shape = 's32[1]{0}', space=sflag, size = 0x4, scoped, tag = 'scoped memory for tpu_custom_call.1']
    #allocation5 [shape = 'u8[163840]{0}', space=vmem, size = 0x28000, scoped, tag = 'input window, operand 1, single buffered']
    #allocation6 [shape = 's32[1]{0}', space=sflag, size = 0x4, scoped, tag = 'scoped memory for tpu_custom_call.1']
    #allocation7 [shape = 'u8[8192]{0}', space=vmem, size = 0x2000, scoped, tag = 'output window, operand 0, single buffered']
    %7 = vsyncpa [#allocation3], 0
    %8 = vsyncpa [#allocation6], 0
    %9 = vsyncpa [#allocation4], 0
    // Predicated region
    $region2: #{tpu_custom_call.1} parent=1 // pred_check
      _
    $region3: #{tpu_custom_call.1} parent=1 // pred_check_branch
      %11 = sbr.rel (0) target = $region5
    $region4: #{tpu_custom_call.1} parent=1 // pred_region
      %s13 = ssub.s32 32, 32
      %14 = vsyncadd [#allocation3], %s13
      %s16 = sshll.u32 [#allocation2], 4
      %s17 = int_to_ptr.vmem [resolvable:$true] %s16
      %19 = dma.hbm_to_vmem [thread:$0]  %s0, 32, %s17, [#allocation3]
    $region5: #{tpu_custom_call.1} parent=1 // pred_fallthru
      _
    // Predicated region
    $region6: #{tpu_custom_call.1} parent=1 // pred_check
      _
    $region7: #{tpu_custom_call.1} parent=1 // pred_check_branch
      %21 = sbr.rel (0) target = $region9
    $region8: #{tpu_custom_call.1} parent=1 // pred_region
      %s23 = ssub.s32 5120, 5120
      %24 = vsyncadd [#allocation6], %s23
      %s25 = sshll.u32 [#allocation5], 4
      %s26 = int_to_ptr.vmem [resolvable:$true] %s25
      %31 = dma.hbm_to_vmem [thread:$0]  %s1, 5120, %s26, [#allocation6], 1024, 1024, 64
    $region9: #{tpu_custom_call.1} parent=1 // pred_fallthru
      _
    // Predicated region
    $region10: #{tpu_custom_call.1} parent=1 // pred_check
      _
    $region11: #{tpu_custom_call.1} parent=1 // pred_check_branch
      %33 = sbr.rel (0) target = $region13
    $region12: #{tpu_custom_call.1} parent=1 // pred_region
      %34 = dma.done [#allocation3], 32
    $region13: #{tpu_custom_call.1} parent=1 // pred_fallthru
      _
    // Predicated region
    $region14: #{tpu_custom_call.1} parent=1 // pred_check
      _
    $region15: #{tpu_custom_call.1} parent=1 // pred_check_branch
      %36 = sbr.rel (0) target = $region17
    $region16: #{tpu_custom_call.1} parent=1 // pred_region
      %37 = dma.done [#allocation6], 5120
    $region17: #{tpu_custom_call.1} parent=1 // pred_fallthru
      _
    %v38 = vld [vmem:[#allocation2] sm:$0x3]
    %v39 = vld [vmem:[#allocation5] sm:$0xff]
    %v40 = vld [vmem:[#allocation5 + $0x8] sm:$0xff]
    %v41 = vld [vmem:[#allocation5 + $0x10] sm:$0xff]
    %v42 = vld [vmem:[#allocation5 + $0x18] sm:$0xff]
    %v43 = vld [vmem:[#allocation5 + $0x20] sm:$0xff]
    %v44 = vld [vmem:[#allocation5 + $0x28] sm:$0xff]
    %v45 = vld [vmem:[#allocation5 + $0x30] sm:$0xff]
    %v46 = vld [vmem:[#allocation5 + $0x38] sm:$0xff]
    %v47 = vld [vmem:[#allocation5 + $0x40] sm:$0xff]
    %v48 = vld [vmem:[#allocation5 + $0x48] sm:$0xff]
    %v49 = vld [vmem:[#allocation5 + $0x50] sm:$0xff]
    %v50 = vld [vmem:[#allocation5 + $0x58] sm:$0xff]
    %v51 = vld [vmem:[#allocation5 + $0x60] sm:$0xff]
    %v52 = vld [vmem:[#allocation5 + $0x68] sm:$0xff]
    %v53 = vld [vmem:[#allocation5 + $0x70] sm:$0xff]
    %v54 = vld [vmem:[#allocation5 + $0x78] sm:$0xff]
    %v55 = vld [vmem:[#allocation5 + $0x80] sm:$0xff]
    %v56 = vld [vmem:[#allocation5 + $0x88] sm:$0xff]
    %v57 = vld [vmem:[#allocation5 + $0x90] sm:$0xff]
    %v58 = vld [vmem:[#allocation5 + $0x98] sm:$0xff]
    %v59 = vld [vmem:[#allocation5 + $0xa0] sm:$0xff]
    %v60 = vld [vmem:[#allocation5 + $0xa8] sm:$0xff]
    %v61 = vld [vmem:[#allocation5 + $0xb0] sm:$0xff]
    %v62 = vld [vmem:[#allocation5 + $0xb8] sm:$0xff]
    %v63 = vld [vmem:[#allocation5 + $0xc0] sm:$0xff]
    %v64 = vld [vmem:[#allocation5 + $0xc8] sm:$0xff]
    %v65 = vld [vmem:[#allocation5 + $0xd0] sm:$0xff]
    %v66 = vld [vmem:[#allocation5 + $0xd8] sm:$0xff]
    %v67 = vld [vmem:[#allocation5 + $0xe0] sm:$0xff]
    %v68 = vld [vmem:[#allocation5 + $0xe8] sm:$0xff]
    %v69 = vld [vmem:[#allocation5 + $0xf0] sm:$0xff]
    %v70 = vld [vmem:[#allocation5 + $0xf8] sm:$0xff]
    %v71 = vld [vmem:[#allocation5 + $0x100] sm:$0xff]
    %v72 = vld [vmem:[#allocation5 + $0x108] sm:$0xff]
    %v73 = vld [vmem:[#allocation5 + $0x110] sm:$0xff]
    %v74 = vld [vmem:[#allocation5 + $0x118] sm:$0xff]
    %v75 = vld [vmem:[#allocation5 + $0x120] sm:$0xff]
    %v76 = vld [vmem:[#allocation5 + $0x128] sm:$0xff]
    %v77 = vld [vmem:[#allocation5 + $0x130] sm:$0xff]
    %v78 = vld [vmem:[#allocation5 + $0x138] sm:$0xff]
    %vm79 = vcmask 326656
    %v81 = vsel %vm79, %v38, 0
    %v83 = vand.u32 %v40, 4294901760
    %84 = vmatprep.subr.mxu0 %v83
    %v85 = vand.u32 %v39, 4294901760
    %86 = vmatpush1.msra.mxu0 %v85
    %v87 = vand.u32 %v48, 4294901760
    %88 = vmatprep.subr.mxu0 %v87
    %v89 = vand.u32 %v47, 4294901760
    %90 = vmatpush1.msra.mxu0 %v89
    %v91 = vand.u32 %v56, 4294901760
    %92 = vmatprep.subr.mxu0 %v91
    %v93 = vand.u32 %v55, 4294901760
    %94 = vmatpush1.msra.mxu0 %v93
    %v95 = vand.u32 %v64, 4294901760
    %96 = vmatprep.subr.mxu0 %v95
    %v97 = vand.u32 %v63, 4294901760
    %98 = vmatpush1.msra.mxu0 %v97
    %v99 = vand.u32 %v72, 4294901760
    %100 = vmatprep.subr.mxu0 %v99
    %v101 = vand.u32 %v71, 4294901760
    %102 = vmatpush1.msra.mxu0 %v101
    %103 = vmatprep.subr.mxu0 0.0
    %104 = vmatpush1.msra.mxu0 0.0
    %105 = vmatprep.subr.mxu0 0.0
    %106 = vmatpush1.msra.mxu0 0.0
    %107 = vmatprep.subr.mxu0 0.0
    %108 = vmatpush1.msra.mxu0 0.0
    %109 = vmatprep.subr.mxu0 0.0
    %110 = vmatpush1.msra.mxu0 0.0
    %111 = vmatprep.subr.mxu0 0.0
    %112 = vmatpush1.msra.mxu0 0.0
    %113 = vmatprep.subr.mxu0 0.0
    %114 = vmatpush1.msra.mxu0 0.0
    %115 = vmatprep.subr.mxu0 0.0
    %116 = vmatpush1.msra.mxu0 0.0
    %117 = vmatprep.subr.mxu0 0.0
    %118 = vmatpush1.msra.mxu0 0.0
    %119 = vmatprep.subr.mxu0 0.0
    %120 = vmatpush1.msra.mxu0 0.0
    %121 = vmatprep.subr.mxu0 0.0
    %122 = vmatpush1.msra.mxu0 0.0
    %123 = vmatprep.subr.mxu0 0.0
    %124 = vmatpush1.msra.mxu0 0.0
    %125 = vmatprep.subr.mxu0 0.0
    %126 = vmatpush1.msra.mxu0 0.0
    %127 = vmatprep.subr.mxu0 0.0
    %128 = vmatpush1.msra.mxu0 0.0
    %129 = vmatprep.subr.mxu0 0.0
    %130 = vmatpush1.msra.mxu0 0.0
    %131 = vmatprep.subr.mxu0 0.0
    %132 = vmatpush1.msra.mxu0 0.0
    %133 = vmatprep.subr.mxu0 0.0
    %134 = vmatpush1.msra.mxu0 0.0
    %135 = vmatprep.subr.mxu0 0.0
    %136 = vmatpush1.msra.mxu0 0.0
    %137 = vmatprep.subr.mxu0 0.0
    %138 = vmatpush1.msra.mxu0 0.0
    %139 = vmatprep.subr.mxu0 0.0
    %140 = vmatpush1.msra.mxu0 0.0
    %141 = vmatprep.subr.mxu0 0.0
    %142 = vmatpush1.msra.mxu0 0.0
    %143 = vmatprep.subr.mxu0 0.0
    %144 = vmatpush1.msra.mxu0 0.0
    %145 = vmatprep.subr.mxu0 0.0
    %146 = vmatpush1.msra.mxu0 0.0
    %147 = vmatprep.subr.mxu0 0.0
    %148 = vmatpush1.msra.mxu0 0.0
    %149 = vmatprep.subr.mxu0 0.0
    %150 = vmatpush1.msra.mxu0 0.0
    %151 = vmatprep.subr.mxu0 0.0
    %152 = vmatpush1.msra.mxu0 0.0
    %153 = vmatprep.subr.mxu0 0.0
    %154 = vmatpush1.msra.mxu0 0.0
    %155 = vmatprep.subr.mxu0 0.0
    %156 = vmatpush1.msra.mxu0 0.0
    %157 = vmatprep.mubr.f32.mxu0 0.0
    %v158 = vand.u32 %v81, 4294901760
    %v159 = vsub.f32 %v81, %v158
    %v160 = vand.u32 %v159, 4294901760
    %v161 = vsub.f32 %v159, %v160
    %v162 = vand.u32 %v161, 4294901760
    %163 = vmatmul.mubr.f32.gmra.mrb[0].mxu0 %v162
    %v164 = vpop.f32.mrb[0].mxu0
    %v165 = vadd.f32 0.0, %v164
    %v166 = vpop.f32.mrb[0].mxu0
    %v167 = vadd.f32 0.0, %v166
    %168 = vdwg.mxu0
    %v169 = vand.u32 %v40, 4294901760
    %v170 = vsub.f32 %v40, %v169
    %v171 = vand.u32 %v170, 4294901760
    %v172 = vsub.f32 %v170, %v171
    %v173 = vand.u32 %v172, 4294901760
    %174 = vmatprep.subr.mxu0 %v173
    %v175 = vand.u32 %v39, 4294901760
    %v176 = vsub.f32 %v39, %v175
    %v177 = vand.u32 %v176, 4294901760
    %v178 = vsub.f32 %v176, %v177
    %v179 = vand.u32 %v178, 4294901760
    %180 = vmatpush1.msra.mxu0 %v179
    %v181 = vand.u32 %v48, 4294901760
    %v182 = vsub.f32 %v48, %v181
    %v183 = vand.u32 %v182, 4294901760
    %v184 = vsub.f32 %v182, %v183
    %v185 = vand.u32 %v184, 4294901760
    %186 = vmatprep.subr.mxu0 %v185
    %v187 = vand.u32 %v47, 4294901760
    %v188 = vsub.f32 %v47, %v187
    %v189 = vand.u32 %v188, 4294901760
    %v190 = vsub.f32 %v188, %v189
    %v191 = vand.u32 %v190, 4294901760
    %192 = vmatpush1.msra.mxu0 %v191
    %v193 = vand.u32 %v56, 4294901760
    %v194 = vsub.f32 %v56, %v193
    %v195 = vand.u32 %v194, 4294901760
    %v196 = vsub.f32 %v194, %v195
    %v197 = vand.u32 %v196, 4294901760
    %198 = vmatprep.subr.mxu0 %v197
    %v199 = vand.u32 %v55, 4294901760
    %v200 = vsub.f32 %v55, %v199
    %v201 = vand.u32 %v200, 4294901760
    %v202 = vsub.f32 %v200, %v201
    %v203 = vand.u32 %v202, 4294901760
    %204 = vmatpush1.msra.mxu0 %v203
    %v205 = vand.u32 %v64, 4294901760
    %v206 = vsub.f32 %v64, %v205
    %v207 = vand.u32 %v206, 4294901760
    %v208 = vsub.f32 %v206, %v207
    %v209 = vand.u32 %v208, 4294901760
    %210 = vmatprep.subr.mxu0 %v209
    %v211 = vand.u32 %v63, 4294901760
    %v212 = vsub.f32 %v63, %v211
    %v213 = vand.u32 %v212, 4294901760
    %v214 = vsub.f32 %v212, %v213
    %v215 = vand.u32 %v214, 4294901760
    %216 = vmatpush1.msra.mxu0 %v215
    %v217 = vand.u32 %v72, 4294901760
    %v218 = vsub.f32 %v72, %v217
    %v219 = vand.u32 %v218, 4294901760
    %v220 = vsub.f32 %v218, %v219
    %v221 = vand.u32 %v220, 4294901760
    %222 = vmatprep.subr.mxu0 %v221
    %v223 = vand.u32 %v71, 4294901760
    %v224 = vsub.f32 %v71, %v223
    %v225 = vand.u32 %v224, 4294901760
    %v226 = vsub.f32 %v224, %v225
    %v227 = vand.u32 %v226, 4294901760
    %228 = vmatpush1.msra.mxu0 %v227
    %229 = vmatprep.subr.mxu0 0.0
    %230 = vmatpush1.msra.mxu0 0.0
    %231 = vmatprep.subr.mxu0 0.0
    %232 = vmatpush1.msra.mxu0 0.0
    %233 = vmatprep.subr.mxu0 0.0
    %234 = vmatpush1.msra.mxu0 0.0
    %235 = vmatprep.subr.mxu0 0.0
    %236 = vmatpush1.msra.mxu0 0.0
    %237 = vmatprep.subr.mxu0 0.0
    %238 = vmatpush1.msra.mxu0 0.0
    %239 = vmatprep.subr.mxu0 0.0
    %240 = vmatpush1.msra.mxu0 0.0
    %241 = vmatprep.subr.mxu0 0.0
    %242 = vmatpush1.msra.mxu0 0.0
    %243 = vmatprep.subr.mxu0 0.0
    %244 = vmatpush1.msra.mxu0 0.0
    %245 = vmatprep.subr.mxu0 0.0
    %246 = vmatpush1.msra.mxu0 0.0
    %247 = vmatprep.subr.mxu0 0.0
    %248 = vmatpush1.msra.mxu0 0.0
    %249 = vmatprep.subr.mxu0 0.0
    %250 = vmatpush1.msra.mxu0 0.0
    %251 = vmatprep.subr.mxu0 0.0
    %252 = vmatpush1.msra.mxu0 0.0
    %253 = vmatprep.subr.mxu0 0.0
    %254 = vmatpush1.msra.mxu0 0.0
    %255 = vmatprep.subr.mxu0 0.0
    %256 = vmatpush1.msra.mxu0 0.0
    %257 = vmatprep.subr.mxu0 0.0
    %258 = vmatpush1.msra.mxu0 0.0
    %259 = vmatprep.subr.mxu0 0.0
    %260 = vmatpush1.msra.mxu0 0.0
    %261 = vmatprep.subr.mxu0 0.0
    %262 = vmatpush1.msra.mxu0 0.0
    %263 = vmatprep.subr.mxu0 0.0
    %264 = vmatpush1.msra.mxu0 0.0
    %265 = vmatprep.subr.mxu0 0.0
    %266 = vmatpush1.msra.mxu0 0.0
    %267 = vmatprep.subr.mxu0 0.0
    %268 = vmatpush1.msra.mxu0 0.0
    %269 = vmatprep.subr.mxu0 0.0
    %270 = vmatpush1.msra.mxu0 0.0
    %271 = vmatprep.subr.mxu0 0.0
    %272 = vmatpush1.msra.mxu0 0.0
    %273 = vmatprep.subr.mxu0 0.0
    %274 = vmatpush1.msra.mxu0 0.0
    %275 = vmatprep.subr.mxu0 0.0
    %276 = vmatpush1.msra.mxu0 0.0
    %277 = vmatprep.subr.mxu0 0.0
    %278 = vmatpush1.msra.mxu0 0.0
    %279 = vmatprep.subr.mxu0 0.0
    %280 = vmatpush1.msra.mxu0 0.0
    %281 = vmatprep.subr.mxu0 0.0
    %282 = vmatpush1.msra.mxu0 0.0
    %283 = vmatprep.mubr.f32.mxu0 0.0
    %v284 = vand.u32 %v81, 4294901760
    %285 = vmatmul.mubr.f32.gmra.mrb[0].mxu0 %v284
    %v286 = vpop.f32.mrb[0].mxu0
    %v287 = vadd.f32 %v165, %v286
    %v288 = vpop.f32.mrb[0].mxu0
    %v289 = vadd.f32 %v167, %v288
    %290 = vdwg.mxu0
    %v291 = vand.u32 %v40, 4294901760
    %v292 = vsub.f32 %v40, %v291
    %293 = vmatprep.subr.mxu0 %v292
    %v294 = vand.u32 %v39, 4294901760
    %v295 = vsub.f32 %v39, %v294
    %296 = vmatpush1.msra.mxu0 %v295
    %v297 = vand.u32 %v48, 4294901760
    %v298 = vsub.f32 %v48, %v297
    %299 = vmatprep.subr.mxu0 %v298
    %v300 = vand.u32 %v47, 4294901760
    %v301 = vsub.f32 %v47, %v300
    %302 = vmatpush1.msra.mxu0 %v301
    %v303 = vand.u32 %v56, 4294901760
    %v304 = vsub.f32 %v56, %v303
    %305 = vmatprep.subr.mxu0 %v304
    %v306 = vand.u32 %v55, 4294901760
    %v307 = vsub.f32 %v55, %v306
    %308 = vmatpush1.msra.mxu0 %v307
    %v309 = vand.u32 %v64, 4294901760
    %v310 = vsub.f32 %v64, %v309
    %311 = vmatprep.subr.mxu0 %v310
    %v312 = vand.u32 %v63, 4294901760
    %v313 = vsub.f32 %v63, %v312
    %314 = vmatpush1.msra.mxu0 %v313
    %v315 = vand.u32 %v72, 4294901760
    %v316 = vsub.f32 %v72, %v315
    %317 = vmatprep.subr.mxu0 %v316
    %v318 = vand.u32 %v71, 4294901760
    %v319 = vsub.f32 %v71, %v318
    %320 = vmatpush1.msra.mxu0 %v319
    %321 = vmatprep.subr.mxu0 0.0
    %322 = vmatpush1.msra.mxu0 0.0
    %323 = vmatprep.subr.mxu0 0.0
    %324 = vmatpush1.msra.mxu0 0.0
    %325 = vmatprep.subr.mxu0 0.0
    %326 = vmatpush1.msra.mxu0 0.0
    %327 = vmatprep.subr.mxu0 0.0
    %328 = vmatpush1.msra.mxu0 0.0
    %329 = vmatprep.subr.mxu0 0.0
    %330 = vmatpush1.msra.mxu0 0.0
    %331 = vmatprep.subr.mxu0 0.0
    %332 = vmatpush1.msra.mxu0 0.0
    %333 = vmatprep.subr.mxu0 0.0
    %334 = vmatpush1.msra.mxu0 0.0
    %335 = vmatprep.subr.mxu0 0.0
    %336 = vmatpush1.msra.mxu0 0.0
    %337 = vmatprep.subr.mxu0 0.0
    %338 = vmatpush1.msra.mxu0 0.0
    %339 = vmatprep.subr.mxu0 0.0
    %340 = vmatpush1.msra.mxu0 0.0
    %341 = vmatprep.subr.mxu0 0.0
    %342 = vmatpush1.msra.mxu0 0.0
    %343 = vmatprep.subr.mxu0 0.0
    %344 = vmatpush1.msra.mxu0 0.0
    %345 = vmatprep.subr.mxu0 0.0
    %346 = vmatpush1.msra.mxu0 0.0
    %347 = vmatprep.subr.mxu0 0.0
    %348 = vmatpush1.msra.mxu0 0.0
    %349 = vmatprep.subr.mxu0 0.0
    %350 = vmatpush1.msra.mxu0 0.0
    %351 = vmatprep.subr.mxu0 0.0
    %352 = vmatpush1.msra.mxu0 0.0
    %353 = vmatprep.subr.mxu0 0.0
    %354 = vmatpush1.msra.mxu0 0.0
    %355 = vmatprep.subr.mxu0 0.0
    %356 = vmatpush1.msra.mxu0 0.0
    %357 = vmatprep.subr.mxu0 0.0
    %358 = vmatpush1.msra.mxu0 0.0
    %359 = vmatprep.subr.mxu0 0.0
    %360 = vmatpush1.msra.mxu0 0.0
    %361 = vmatprep.subr.mxu0 0.0
    %362 = vmatpush1.msra.mxu0 0.0
    %363 = vmatprep.subr.mxu0 0.0
    %364 = vmatpush1.msra.mxu0 0.0
    %365 = vmatprep.subr.mxu0 0.0
    %366 = vmatpush1.msra.mxu0 0.0
    %367 = vmatprep.subr.mxu0 0.0
    %368 = vmatpush1.msra.mxu0 0.0
    %369 = vmatprep.subr.mxu0 0.0
    %370 = vmatpush1.msra.mxu0 0.0
    %371 = vmatprep.subr.mxu0 0.0
    %372 = vmatpush1.msra.mxu0 0.0
    %373 = vmatprep.subr.mxu0 0.0
    %374 = vmatpush1.msra.mxu0 0.0
    %375 = vmatprep.mubr.f32.mxu0 0.0
    %v376 = vand.u32 %v81, 4294901760
    %v377 = vsub.f32 %v81, %v376
    %378 = vmatmul.mubr.f32.gmra.mrb[0].mxu0 %v377
    %v379 = vpop.f32.mrb[0].mxu0
    %v380 = vadd.f32 %v287, %v379
    %v381 = vpop.f32.mrb[0].mxu0
    %v382 = vadd.f32 %v289, %v381
    %383 = vdwg.mxu0
    %v384 = vand.u32 %v40, 4294901760
    %385 = vmatprep.subr.mxu0 %v384
    %v386 = vand.u32 %v39, 4294901760
    %387 = vmatpush1.msra.mxu0 %v386
    %v388 = vand.u32 %v48, 4294901760
    %389 = vmatprep.subr.mxu0 %v388
    %v390 = vand.u32 %v47, 4294901760
    %391 = vmatpush1.msra.mxu0 %v390
    %v392 = vand.u32 %v56, 4294901760
    %393 = vmatprep.subr.mxu0 %v392
    %v394 = vand.u32 %v55, 4294901760
    %395 = vmatpush1.msra.mxu0 %v394
    %v396 = vand.u32 %v64, 4294901760
    %397 = vmatprep.subr.mxu0 %v396
    %v398 = vand.u32 %v63, 4294901760
    %399 = vmatpush1.msra.mxu0 %v398
    %v400 = vand.u32 %v72, 4294901760
    %401 = vmatprep.subr.mxu0 %v400
    %v402 = vand.u32 %v71, 4294901760
    %403 = vmatpush1.msra.mxu0 %v402
    %404 = vmatprep.subr.mxu0 0.0
    %405 = vmatpush1.msra.mxu0 0.0
    %406 = vmatprep.subr.mxu0 0.0
    %407 = vmatpush1.msra.mxu0 0.0
    %408 = vmatprep.subr.mxu0 0.0
    %409 = vmatpush1.msra.mxu0 0.0
    %410 = vmatprep.subr.mxu0 0.0
    %411 = vmatpush1.msra.mxu0 0.0
    %412 = vmatprep.subr.mxu0 0.0
    %413 = vmatpush1.msra.mxu0 0.0
    %414 = vmatprep.subr.mxu0 0.0
    %415 = vmatpush1.msra.mxu0 0.0
    %416 = vmatprep.subr.mxu0 0.0
    %417 = vmatpush1.msra.mxu0 0.0
    %418 = vmatprep.subr.mxu0 0.0
    %419 = vmatpush1.msra.mxu0 0.0
    %420 = vmatprep.subr.mxu0 0.0
    %421 = vmatpush1.msra.mxu0 0.0
    %422 = vmatprep.subr.mxu0 0.0
    %423 = vmatpush1.msra.mxu0 0.0
    %424 = vmatprep.subr.mxu0 0.0
    %425 = vmatpush1.msra.mxu0 0.0
    %426 = vmatprep.subr.mxu0 0.0
    %427 = vmatpush1.msra.mxu0 0.0
    %428 = vmatprep.subr.mxu0 0.0
    %429 = vmatpush1.msra.mxu0 0.0
    %430 = vmatprep.subr.mxu0 0.0
    %431 = vmatpush1.msra.mxu0 0.0
    %432 = vmatprep.subr.mxu0 0.0
    %433 = vmatpush1.msra.mxu0 0.0
    %434 = vmatprep.subr.mxu0 0.0
    %435 = vmatpush1.msra.mxu0 0.0
    %436 = vmatprep.subr.mxu0 0.0
    %437 = vmatpush1.msra.mxu0 0.0
    %438 = vmatprep.subr.mxu0 0.0
    %439 = vmatpush1.msra.mxu0 0.0
    %440 = vmatprep.subr.mxu0 0.0
    %441 = vmatpush1.msra.mxu0 0.0
    %442 = vmatprep.subr.mxu0 0.0
    %443 = vmatpush1.msra.mxu0 0.0
    %444 = vmatprep.subr.mxu0 0.0
    %445 = vmatpush1.msra.mxu0 0.0
    %446 = vmatprep.subr.mxu0 0.0
    %447 = vmatpush1.msra.mxu0 0.0
    %448 = vmatprep.subr.mxu0 0.0
    %449 = vmatpush1.msra.mxu0 0.0
    %450 = vmatprep.subr.mxu0 0.0
    %451 = vmatpush1.msra.mxu0 0.0
    %452 = vmatprep.subr.mxu0 0.0
    %453 = vmatpush1.msra.mxu0 0.0
    %454 = vmatprep.subr.mxu0 0.0
    %455 = vmatpush1.msra.mxu0 0.0
    %456 = vmatprep.subr.mxu0 0.0
    %457 = vmatpush1.msra.mxu0 0.0
    %458 = vmatprep.mubr.f32.mxu0 0.0
    %v459 = vand.u32 %v81, 4294901760
    %v460 = vsub.f32 %v81, %v459
    %v461 = vand.u32 %v460, 4294901760
    %462 = vmatmul.mubr.f32.gmra.mrb[0].mxu0 %v461
    %v463 = vpop.f32.mrb[0].mxu0
    %v464 = vadd.f32 %v380, %v463
    %v465 = vpop.f32.mrb[0].mxu0
    %v466 = vadd.f32 %v382, %v465
    %467 = vdwg.mxu0
    %v468 = vand.u32 %v40, 4294901760
    %v469 = vsub.f32 %v40, %v468
    %v470 = vand.u32 %v469, 4294901760
    %471 = vmatprep.subr.mxu0 %v470
    %v472 = vand.u32 %v39, 4294901760
    %v473 = vsub.f32 %v39, %v472
    %v474 = vand.u32 %v473, 4294901760
    %475 = vmatpush1.msra.mxu0 %v474
    %v476 = vand.u32 %v48, 4294901760
    %v477 = vsub.f32 %v48, %v476
    %v478 = vand.u32 %v477, 4294901760
    %479 = vmatprep.subr.mxu0 %v478
    %v480 = vand.u32 %v47, 4294901760
    %v481 = vsub.f32 %v47, %v480
    %v482 = vand.u32 %v481, 4294901760
    %483 = vmatpush1.msra.mxu0 %v482
    %v484 = vand.u32 %v56, 4294901760
    %v485 = vsub.f32 %v56, %v484
    %v486 = vand.u32 %v485, 4294901760
    %487 = vmatprep.subr.mxu0 %v486
    %v488 = vand.u32 %v55, 4294901760
    %v489 = vsub.f32 %v55, %v488
    %v490 = vand.u32 %v489, 4294901760
    %491 = vmatpush1.msra.mxu0 %v490
    %v492 = vand.u32 %v64, 4294901760
    %v493 = vsub.f32 %v64, %v492
    %v494 = vand.u32 %v493, 4294901760
    %495 = vmatprep.subr.mxu0 %v494
    %v496 = vand.u32 %v63, 4294901760
    %v497 = vsub.f32 %v63, %v496
    %v498 = vand.u32 %v497, 4294901760
    %499 = vmatpush1.msra.mxu0 %v498
    %v500 = vand.u32 %v72, 4294901760
    %v501 = vsub.f32 %v72, %v500
    %v502 = vand.u32 %v501, 4294901760
    %503 = vmatprep.subr.mxu0 %v502
    %v504 = vand.u32 %v71, 4294901760
    %v505 = vsub.f32 %v71, %v504
    %v506 = vand.u32 %v505, 4294901760
    %507 = vmatpush1.msra.mxu0 %v506
    %508 = vmatprep.subr.mxu0 0.0
    %509 = vmatpush1.msra.mxu0 0.0
    %510 = vmatprep.subr.mxu0 0.0
    %511 = vmatpush1.msra.mxu0 0.0
    %512 = vmatprep.subr.mxu0 0.0
    %513 = vmatpush1.msra.mxu0 0.0
    %514 = vmatprep.subr.mxu0 0.0
    %515 = vmatpush1.msra.mxu0 0.0
    %516 = vmatprep.subr.mxu0 0.0
    %517 = vmatpush1.msra.mxu0 0.0
    %518 = vmatprep.subr.mxu0 0.0
    %519 = vmatpush1.msra.mxu0 0.0
    %520 = vmatprep.subr.mxu0 0.0
    %521 = vmatpush1.msra.mxu0 0.0
    %522 = vmatprep.subr.mxu0 0.0
    %523 = vmatpush1.msra.mxu0 0.0
    %524 = vmatprep.subr.mxu0 0.0
    %525 = vmatpush1.msra.mxu0 0.0
    %526 = vmatprep.subr.mxu0 0.0
    %527 = vmatpush1.msra.mxu0 0.0
    %528 = vmatprep.subr.mxu0 0.0
    %529 = vmatpush1.msra.mxu0 0.0
    %530 = vmatprep.subr.mxu0 0.0
    %531 = vmatpush1.msra.mxu0 0.0
    %532 = vmatprep.subr.mxu0 0.0
    %533 = vmatpush1.msra.mxu0 0.0
    %534 = vmatprep.subr.mxu0 0.0
    %535 = vmatpush1.msra.mxu0 0.0
    %536 = vmatprep.subr.mxu0 0.0
    %537 = vmatpush1.msra.mxu0 0.0
    %538 = vmatprep.subr.mxu0 0.0
    %539 = vmatpush1.msra.mxu0 0.0
    %540 = vmatprep.subr.mxu0 0.0
    %541 = vmatpush1.msra.mxu0 0.0
    %542 = vmatprep.subr.mxu0 0.0
    %543 = vmatpush1.msra.mxu0 0.0
    %544 = vmatprep.subr.mxu0 0.0
    %545 = vmatpush1.msra.mxu0 0.0
    %546 = vmatprep.subr.mxu0 0.0
    %547 = vmatpush1.msra.mxu0 0.0
    %548 = vmatprep.subr.mxu0 0.0
    %549 = vmatpush1.msra.mxu0 0.0
    %550 = vmatprep.subr.mxu0 0.0
    %551 = vmatpush1.msra.mxu0 0.0
    %552 = vmatprep.subr.mxu0 0.0
    %553 = vmatpush1.msra.mxu0 0.0
    %554 = vmatprep.subr.mxu0 0.0
    %555 = vmatpush1.msra.mxu0 0.0
    %556 = vmatprep.subr.mxu0 0.0
    %557 = vmatpush1.msra.mxu0 0.0
    %558 = vmatprep.subr.mxu0 0.0
    %559 = vmatpush1.msra.mxu0 0.0
    %560 = vmatprep.subr.mxu0 0.0
    %561 = vmatpush1.msra.mxu0 0.0
    %562 = vmatprep.mubr.f32.mxu0 0.0
    %v563 = vand.u32 %v81, 4294901760
    %564 = vmatmul.mubr.f32.gmra.mrb[0].mxu0 %v563
    %v565 = vpop.f32.mrb[0].mxu0
    %v566 = vadd.f32 %v464, %v565
    %v567 = vpop.f32.mrb[0].mxu0
    %v568 = vadd.f32 %v466, %v567
    %569 = vdwg.mxu0
    %v570 = vand.u32 %v40, 4294901760
    %571 = vmatprep.subr.mxu0 %v570
    %v572 = vand.u32 %v39, 4294901760
    %573 = vmatpush1.msra.mxu0 %v572
    %v574 = vand.u32 %v48, 4294901760
    %575 = vmatprep.subr.mxu0 %v574
    %v576 = vand.u32 %v47, 4294901760
    %577 = vmatpush1.msra.mxu0 %v576
    %v578 = vand.u32 %v56, 4294901760
    %579 = vmatprep.subr.mxu0 %v578
    %v580 = vand.u32 %v55, 4294901760
    %581 = vmatpush1.msra.mxu0 %v580
    %v582 = vand.u32 %v64, 4294901760
    %583 = vmatprep.subr.mxu0 %v582
    %v584 = vand.u32 %v63, 4294901760
    %585 = vmatpush1.msra.mxu0 %v584
    %v586 = vand.u32 %v72, 4294901760
    %587 = vmatprep.subr.mxu0 %v586
    %v588 = vand.u32 %v71, 4294901760
    %589 = vmatpush1.msra.mxu0 %v588
    %590 = vmatprep.subr.mxu0 0.0
    %591 = vmatpush1.msra.mxu0 0.0
    %592 = vmatprep.subr.mxu0 0.0
    %593 = vmatpush1.msra.mxu0 0.0
    %594 = vmatprep.subr.mxu0 0.0
    %595 = vmatpush1.msra.mxu0 0.0
    %596 = vmatprep.subr.mxu0 0.0
    %597 = vmatpush1.msra.mxu0 0.0
    %598 = vmatprep.subr.mxu0 0.0
    %599 = vmatpush1.msra.mxu0 0.0
    %600 = vmatprep.subr.mxu0 0.0
    %601 = vmatpush1.msra.mxu0 0.0
    %602 = vmatprep.subr.mxu0 0.0
    %603 = vmatpush1.msra.mxu0 0.0
    %604 = vmatprep.subr.mxu0 0.0
    %605 = vmatpush1.msra.mxu0 0.0
    %606 = vmatprep.subr.mxu0 0.0
    %607 = vmatpush1.msra.mxu0 0.0
    %608 = vmatprep.subr.mxu0 0.0
    %609 = vmatpush1.msra.mxu0 0.0
    %610 = vmatprep.subr.mxu0 0.0
    %611 = vmatpush1.msra.mxu0 0.0
    %612 = vmatprep.subr.mxu0 0.0
    %613 = vmatpush1.msra.mxu0 0.0
    %614 = vmatprep.subr.mxu0 0.0
    %615 = vmatpush1.msra.mxu0 0.0
    %616 = vmatprep.subr.mxu0 0.0
    %617 = vmatpush1.msra.mxu0 0.0
    %618 = vmatprep.subr.mxu0 0.0
    %619 = vmatpush1.msra.mxu0 0.0
    %620 = vmatprep.subr.mxu0 0.0
    %621 = vmatpush1.msra.mxu0 0.0
    %622 = vmatprep.subr.mxu0 0.0
    %623 = vmatpush1.msra.mxu0 0.0
    %624 = vmatprep.subr.mxu0 0.0
    %625 = vmatpush1.msra.mxu0 0.0
    %626 = vmatprep.subr.mxu0 0.0
    %627 = vmatpush1.msra.mxu0 0.0
    %628 = vmatprep.subr.mxu0 0.0
    %629 = vmatpush1.msra.mxu0 0.0
    %630 = vmatprep.subr.mxu0 0.0
    %631 = vmatpush1.msra.mxu0 0.0
    %632 = vmatprep.subr.mxu0 0.0
    %633 = vmatpush1.msra.mxu0 0.0
    %634 = vmatprep.subr.mxu0 0.0
    %635 = vmatpush1.msra.mxu0 0.0
    %636 = vmatprep.subr.mxu0 0.0
    %637 = vmatpush1.msra.mxu0 0.0
    %638 = vmatprep.subr.mxu0 0.0
    %639 = vmatpush1.msra.mxu0 0.0
    %640 = vmatprep.subr.mxu0 0.0
    %641 = vmatpush1.msra.mxu0 0.0
    %642 = vmatprep.subr.mxu0 0.0
    %643 = vmatpush1.msra.mxu0 0.0
    %644 = vmatprep.mubr.f32.mxu0 0.0
    %v645 = vand.u32 %v81, 4294901760
    %646 = vmatmul.mubr.f32.gmra.mrb[0].mxu0 %v645
    %v647 = vpop.f32.mrb[0].mxu0
    %v648 = vadd.f32 %v566, %v647
    %v649 = vpop.f32.mrb[0].mxu0
    %v650 = vadd.f32 %v568, %v649
    %651 = vdwg.mxu0
    %v652 = vand.u32 %v42, 4294901760
    %653 = vmatprep.subr.mxu0 %v652
    %v654 = vand.u32 %v41, 4294901760
    %655 = vmatpush1.msra.mxu0 %v654
    %v656 = vand.u32 %v50, 4294901760
    %657 = vmatprep.subr.mxu0 %v656
    %v658 = vand.u32 %v49, 4294901760
    %659 = vmatpush1.msra.mxu0 %v658
    %v660 = vand.u32 %v58, 4294901760
    %661 = vmatprep.subr.mxu0 %v660
    %v662 = vand.u32 %v57, 4294901760
    %663 = vmatpush1.msra.mxu0 %v662
    %v664 = vand.u32 %v66, 4294901760
    %665 = vmatprep.subr.mxu0 %v664
    %v666 = vand.u32 %v65, 4294901760
    %667 = vmatpush1.msra.mxu0 %v666
    %v668 = vand.u32 %v74, 4294901760
    %669 = vmatprep.subr.mxu0 %v668
    %v670 = vand.u32 %v73, 4294901760
    %671 = vmatpush1.msra.mxu0 %v670
    %672 = vmatprep.subr.mxu0 0.0
    %673 = vmatpush1.msra.mxu0 0.0
    %674 = vmatprep.subr.mxu0 0.0
    %675 = vmatpush1.msra.mxu0 0.0
    %676 = vmatprep.subr.mxu0 0.0
    %677 = vmatpush1.msra.mxu0 0.0
    %678 = vmatprep.subr.mxu0 0.0
    %679 = vmatpush1.msra.mxu0 0.0
    %680 = vmatprep.subr.mxu0 0.0
    %681 = vmatpush1.msra.mxu0 0.0
    %682 = vmatprep.subr.mxu0 0.0
    %683 = vmatpush1.msra.mxu0 0.0
    %684 = vmatprep.subr.mxu0 0.0
    %685 = vmatpush1.msra.mxu0 0.0
    %686 = vmatprep.subr.mxu0 0.0
    %687 = vmatpush1.msra.mxu0 0.0
    %688 = vmatprep.subr.mxu0 0.0
    %689 = vmatpush1.msra.mxu0 0.0
    %690 = vmatprep.subr.mxu0 0.0
    %691 = vmatpush1.msra.mxu0 0.0
    %692 = vmatprep.subr.mxu0 0.0
    %693 = vmatpush1.msra.mxu0 0.0
    %694 = vmatprep.subr.mxu0 0.0
    %695 = vmatpush1.msra.mxu0 0.0
    %696 = vmatprep.subr.mxu0 0.0
    %697 = vmatpush1.msra.mxu0 0.0
    %698 = vmatprep.subr.mxu0 0.0
    %699 = vmatpush1.msra.mxu0 0.0
    %700 = vmatprep.subr.mxu0 0.0
    %701 = vmatpush1.msra.mxu0 0.0
    %702 = vmatprep.subr.mxu0 0.0
    %703 = vmatpush1.msra.mxu0 0.0
    %704 = vmatprep.subr.mxu0 0.0
    %705 = vmatpush1.msra.mxu0 0.0
    %706 = vmatprep.subr.mxu0 0.0
    %707 = vmatpush1.msra.mxu0 0.0
    %708 = vmatprep.subr.mxu0 0.0
    %709 = vmatpush1.msra.mxu0 0.0
    %710 = vmatprep.subr.mxu0 0.0
    %711 = vmatpush1.msra.mxu0 0.0
    %712 = vmatprep.subr.mxu0 0.0
    %713 = vmatpush1.msra.mxu0 0.0
    %714 = vmatprep.subr.mxu0 0.0
    %715 = vmatpush1.msra.mxu0 0.0
    %716 = vmatprep.subr.mxu0 0.0
    %717 = vmatpush1.msra.mxu0 0.0
    %718 = vmatprep.subr.mxu0 0.0
    %719 = vmatpush1.msra.mxu0 0.0
    %720 = vmatprep.subr.mxu0 0.0
    %721 = vmatpush1.msra.mxu0 0.0
    %722 = vmatprep.subr.mxu0 0.0
    %723 = vmatpush1.msra.mxu0 0.0
    %724 = vmatprep.subr.mxu0 0.0
    %725 = vmatpush1.msra.mxu0 0.0
    %726 = vmatprep.mubr.f32.mxu0 0.0
    %v727 = vand.u32 %v81, 4294901760
    %v728 = vsub.f32 %v81, %v727
    %v729 = vand.u32 %v728, 4294901760
    %v730 = vsub.f32 %v728, %v729
    %v731 = vand.u32 %v730, 4294901760
    %732 = vmatmul.mubr.f32.gmra.mrb[0].mxu0 %v731
    %v733 = vpop.f32.mrb[0].mxu0
    %v734 = vadd.f32 0.0, %v733
    %v735 = vpop.f32.mrb[0].mxu0
    %v736 = vadd.f32 0.0, %v735
    %737 = vdwg.mxu0
    %v738 = vand.u32 %v42, 4294901760
    %v739 = vsub.f32 %v42, %v738
    %v740 = vand.u32 %v739, 4294901760
    %v741 = vsub.f32 %v739, %v740
    %v742 = vand.u32 %v741, 4294901760
    %743 = vmatprep.subr.mxu0 %v742
    %v744 = vand.u32 %v41, 4294901760
    %v745 = vsub.f32 %v41, %v744
    %v746 = vand.u32 %v745, 4294901760
    %v747 = vsub.f32 %v745, %v746
    %v748 = vand.u32 %v747, 4294901760
    %749 = vmatpush1.msra.mxu0 %v748
    %v750 = vand.u32 %v50, 4294901760
    %v751 = vsub.f32 %v50, %v750
    %v752 = vand.u32 %v751, 4294901760
    %v753 = vsub.f32 %v751, %v752
    %v754 = vand.u32 %v753, 4294901760
    %755 = vmatprep.subr.mxu0 %v754
    %v756 = vand.u32 %v49, 4294901760
    %v757 = vsub.f32 %v49, %v756
    %v758 = vand.u32 %v757, 4294901760
    %v759 = vsub.f32 %v757, %v758
    %v760 = vand.u32 %v759, 4294901760
    %761 = vmatpush1.msra.mxu0 %v760
    %v762 = vand.u32 %v58, 4294901760
    %v763 = vsub.f32 %v58, %v762
    %v764 = vand.u32 %v763, 4294901760
    %v765 = vsub.f32 %v763, %v764
    %v766 = vand.u32 %v765, 4294901760
    %767 = vmatprep.subr.mxu0 %v766
    %v768 = vand.u32 %v57, 4294901760
    %v769 = vsub.f32 %v57, %v768
    %v770 = vand.u32 %v769, 4294901760
    %v771 = vsub.f32 %v769, %v770
    %v772 = vand.u32 %v771, 4294901760
    %773 = vmatpush1.msra.mxu0 %v772
    %v774 = vand.u32 %v66, 4294901760
    %v775 = vsub.f32 %v66, %v774
    %v776 = vand.u32 %v775, 4294901760
    %v777 = vsub.f32 %v775, %v776
    %v778 = vand.u32 %v777, 4294901760
    %779 = vmatprep.subr.mxu0 %v778
    %v780 = vand.u32 %v65, 4294901760
    %v781 = vsub.f32 %v65, %v780
    %v782 = vand.u32 %v781, 4294901760
    %v783 = vsub.f32 %v781, %v782
    %v784 = vand.u32 %v783, 4294901760
    %785 = vmatpush1.msra.mxu0 %v784
    %v786 = vand.u32 %v74, 4294901760
    %v787 = vsub.f32 %v74, %v786
    %v788 = vand.u32 %v787, 4294901760
    %v789 = vsub.f32 %v787, %v788
    %v790 = vand.u32 %v789, 4294901760
    %791 = vmatprep.subr.mxu0 %v790
    %v792 = vand.u32 %v73, 4294901760
    %v793 = vsub.f32 %v73, %v792
    %v794 = vand.u32 %v793, 4294901760
    %v795 = vsub.f32 %v793, %v794
    %v796 = vand.u32 %v795, 4294901760
    %797 = vmatpush1.msra.mxu0 %v796
    %798 = vmatprep.subr.mxu0 0.0
    %799 = vmatpush1.msra.mxu0 0.0
    %800 = vmatprep.subr.mxu0 0.0
    %801 = vmatpush1.msra.mxu0 0.0
    %802 = vmatprep.subr.mxu0 0.0
    %803 = vmatpush1.msra.mxu0 0.0
    %804 = vmatprep.subr.mxu0 0.0
    %805 = vmatpush1.msra.mxu0 0.0
    %806 = vmatprep.subr.mxu0 0.0
    %807 = vmatpush1.msra.mxu0 0.0
    %808 = vmatprep.subr.mxu0 0.0
    %809 = vmatpush1.msra.mxu0 0.0
    %810 = vmatprep.subr.mxu0 0.0
    %811 = vmatpush1.msra.mxu0 0.0
    %812 = vmatprep.subr.mxu0 0.0
    %813 = vmatpush1.msra.mxu0 0.0
    %814 = vmatprep.subr.mxu0 0.0
    %815 = vmatpush1.msra.mxu0 0.0
    %816 = vmatprep.subr.mxu0 0.0
    %817 = vmatpush1.msra.mxu0 0.0
    %818 = vmatprep.subr.mxu0 0.0
    %819 = vmatpush1.msra.mxu0 0.0
    %820 = vmatprep.subr.mxu0 0.0
    %821 = vmatpush1.msra.mxu0 0.0
    %822 = vmatprep.subr.mxu0 0.0
    %823 = vmatpush1.msra.mxu0 0.0
    %824 = vmatprep.subr.mxu0 0.0
    %825 = vmatpush1.msra.mxu0 0.0
    %826 = vmatprep.subr.mxu0 0.0
    %827 = vmatpush1.msra.mxu0 0.0
    %828 = vmatprep.subr.mxu0 0.0
    %829 = vmatpush1.msra.mxu0 0.0
    %830 = vmatprep.subr.mxu0 0.0
    %831 = vmatpush1.msra.mxu0 0.0
    %832 = vmatprep.subr.mxu0 0.0
    %833 = vmatpush1.msra.mxu0 0.0
    %834 = vmatprep.subr.mxu0 0.0
    %835 = vmatpush1.msra.mxu0 0.0
    %836 = vmatprep.subr.mxu0 0.0
    %837 = vmatpush1.msra.mxu0 0.0
    %838 = vmatprep.subr.mxu0 0.0
    %839 = vmatpush1.msra.mxu0 0.0
    %840 = vmatprep.subr.mxu0 0.0
    %841 = vmatpush1.msra.mxu0 0.0
    %842 = vmatprep.subr.mxu0 0.0
    %843 = vmatpush1.msra.mxu0 0.0
    %844 = vmatprep.subr.mxu0 0.0
    %845 = vmatpush1.msra.mxu0 0.0
    %846 = vmatprep.subr.mxu0 0.0
    %847 = vmatpush1.msra.mxu0 0.0
    %848 = vmatprep.subr.mxu0 0.0
    %849 = vmatpush1.msra.mxu0 0.0
    %850 = vmatprep.subr.mxu0 0.0
    %851 = vmatpush1.msra.mxu0 0.0
    %852 = vmatprep.mubr.f32.mxu0 0.0
    %v853 = vand.u32 %v81, 4294901760
    %854 = vmatmul.mubr.f32.gmra.mrb[0].mxu0 %v853
    %v855 = vpop.f32.mrb[0].mxu0
    %v856 = vadd.f32 %v734, %v855
    %v857 = vpop.f32.mrb[0].mxu0
    %v858 = vadd.f32 %v736, %v857
    %859 = vdwg.mxu0
    %v860 = vand.u32 %v42, 4294901760
    %v861 = vsub.f32 %v42, %v860
    %862 = vmatprep.subr.mxu0 %v861
    %v863 = vand.u32 %v41, 4294901760
    %v864 = vsub.f32 %v41, %v863
    %865 = vmatpush1.msra.mxu0 %v864
    %v866 = vand.u32 %v50, 4294901760
    %v867 = vsub.f32 %v50, %v866
    %868 = vmatprep.subr.mxu0 %v867
    %v869 = vand.u32 %v49, 4294901760
    %v870 = vsub.f32 %v49, %v869
    %871 = vmatpush1.msra.mxu0 %v870
    %v872 = vand.u32 %v58, 4294901760
    %v873 = vsub.f32 %v58, %v872
    %874 = vmatprep.subr.mxu0 %v873
    %v875 = vand.u32 %v57, 4294901760
    %v876 = vsub.f32 %v57, %v875
    %877 = vmatpush1.msra.mxu0 %v876
    %v878 = vand.u32 %v66, 4294901760
    %v879 = vsub.f32 %v66, %v878
    %880 = vmatprep.subr.mxu0 %v879
    %v881 = vand.u32 %v65, 4294901760
    %v882 = vsub.f32 %v65, %v881
    %883 = vmatpush1.msra.mxu0 %v882
    %v884 = vand.u32 %v74, 4294901760
    %v885 = vsub.f32 %v74, %v884
    %886 = vmatprep.subr.mxu0 %v885
    %v887 = vand.u32 %v73, 4294901760
    %v888 = vsub.f32 %v73, %v887
    %889 = vmatpush1.msra.mxu0 %v888
    %890 = vmatprep.subr.mxu0 0.0
    %891 = vmatpush1.msra.mxu0 0.0
    %892 = vmatprep.subr.mxu0 0.0
    %893 = vmatpush1.msra.mxu0 0.0
    %894 = vmatprep.subr.mxu0 0.0
    %895 = vmatpush1.msra.mxu0 0.0
    %896 = vmatprep.subr.mxu0 0.0
    %897 = vmatpush1.msra.mxu0 0.0
    %898 = vmatprep.subr.mxu0 0.0
    %899 = vmatpush1.msra.mxu0 0.0
    %900 = vmatprep.subr.mxu0 0.0
    %901 = vmatpush1.msra.mxu0 0.0
    %902 = vmatprep.subr.mxu0 0.0
    %903 = vmatpush1.msra.mxu0 0.0
    %904 = vmatprep.subr.mxu0 0.0
    %905 = vmatpush1.msra.mxu0 0.0
    %906 = vmatprep.subr.mxu0 0.0
    %907 = vmatpush1.msra.mxu0 0.0
    %908 = vmatprep.subr.mxu0 0.0
    %909 = vmatpush1.msra.mxu0 0.0
    %910 = vmatprep.subr.mxu0 0.0
    %911 = vmatpush1.msra.mxu0 0.0
    %912 = vmatprep.subr.mxu0 0.0
    %913 = vmatpush1.msra.mxu0 0.0
    %914 = vmatprep.subr.mxu0 0.0
    %915 = vmatpush1.msra.mxu0 0.0
    %916 = vmatprep.subr.mxu0 0.0
    %917 = vmatpush1.msra.mxu0 0.0
    %918 = vmatprep.subr.mxu0 0.0
    %919 = vmatpush1.msra.mxu0 0.0
    %920 = vmatprep.subr.mxu0 0.0
    %921 = vmatpush1.msra.mxu0 0.0
    %922 = vmatprep.subr.mxu0 0.0
    %923 = vmatpush1.msra.mxu0 0.0
    %924 = vmatprep.subr.mxu0 0.0
    %925 = vmatpush1.msra.mxu0 0.0
    %926 = vmatprep.subr.mxu0 0.0
    %927 = vmatpush1.msra.mxu0 0.0
    %928 = vmatprep.subr.mxu0 0.0
    %929 = vmatpush1.msra.mxu0 0.0
    %930 = vmatprep.subr.mxu0 0.0
    %931 = vmatpush1.msra.mxu0 0.0
    %932 = vmatprep.subr.mxu0 0.0
    %933 = vmatpush1.msra.mxu0 0.0
    %934 = vmatprep.subr.mxu0 0.0
    %935 = vmatpush1.msra.mxu0 0.0
    %936 = vmatprep.subr.mxu0 0.0
    %937 = vmatpush1.msra.mxu0 0.0
    %938 = vmatprep.subr.mxu0 0.0
    %939 = vmatpush1.msra.mxu0 0.0
    %940 = vmatprep.subr.mxu0 0.0
    %941 = vmatpush1.msra.mxu0 0.0
    %942 = vmatprep.subr.mxu0 0.0
    %943 = vmatpush1.msra.mxu0 0.0
    %944 = vmatprep.mubr.f32.mxu0 0.0
    %v945 = vand.u32 %v81, 4294901760
    %v946 = vsub.f32 %v81, %v945
    %947 = vmatmul.mubr.f32.gmra.mrb[0].mxu0 %v946
    %v948 = vpop.f32.mrb[0].mxu0
    %v949 = vadd.f32 %v856, %v948
    %v950 = vpop.f32.mrb[0].mxu0
    %v951 = vadd.f32 %v858, %v950
    %952 = vdwg.mxu0
    %v953 = vand.u32 %v42, 4294901760
    %954 = vmatprep.subr.mxu0 %v953
    %v955 = vand.u32 %v41, 4294901760
    %956 = vmatpush1.msra.mxu0 %v955
    %v957 = vand.u32 %v50, 4294901760
    %958 = vmatprep.subr.mxu0 %v957
    %v959 = vand.u32 %v49, 4294901760
    %960 = vmatpush1.msra.mxu0 %v959
    %v961 = vand.u32 %v58, 4294901760
    %962 = vmatprep.subr.mxu0 %v961
    %v963 = vand.u32 %v57, 4294901760
    %964 = vmatpush1.msra.mxu0 %v963
    %v965 = vand.u32 %v66, 4294901760
    %966 = vmatprep.subr.mxu0 %v965
    %v967 = vand.u32 %v65, 4294901760
    %968 = vmatpush1.msra.mxu0 %v967
    %v969 = vand.u32 %v74, 4294901760
    %970 = vmatprep.subr.mxu0 %v969
    %v971 = vand.u32 %v73, 4294901760
    %972 = vmatpush1.msra.mxu0 %v971
    %973 = vmatprep.subr.mxu0 0.0
    %974 = vmatpush1.msra.mxu0 0.0
    %975 = vmatprep.subr.mxu0 0.0
    %976 = vmatpush1.msra.mxu0 0.0
    %977 = vmatprep.subr.mxu0 0.0
    %978 = vmatpush1.msra.mxu0 0.0
    %979 = vmatprep.subr.mxu0 0.0
    %980 = vmatpush1.msra.mxu0 0.0
    %981 = vmatprep.subr.mxu0 0.0
    %982 = vmatpush1.msra.mxu0 0.0
    %983 = vmatprep.subr.mxu0 0.0
    %984 = vmatpush1.msra.mxu0 0.0
    %985 = vmatprep.subr.mxu0 0.0
    %986 = vmatpush1.msra.mxu0 0.0
    %987 = vmatprep.subr.mxu0 0.0
    %988 = vmatpush1.msra.mxu0 0.0
    %989 = vmatprep.subr.mxu0 0.0
    %990 = vmatpush1.msra.mxu0 0.0
    %991 = vmatprep.subr.mxu0 0.0
    %992 = vmatpush1.msra.mxu0 0.0
    %993 = vmatprep.subr.mxu0 0.0
    %994 = vmatpush1.msra.mxu0 0.0
    %995 = vmatprep.subr.mxu0 0.0
    %996 = vmatpush1.msra.mxu0 0.0
    %997 = vmatprep.subr.mxu0 0.0
    %998 = vmatpush1.msra.mxu0 0.0
    %999 = vmatprep.subr.mxu0 0.0
    %1000 = vmatpush1.msra.mxu0 0.0
    %1001 = vmatprep.subr.mxu0 0.0
    %1002 = vmatpush1.msra.mxu0 0.0
    %1003 = vmatprep.subr.mxu0 0.0
    %1004 = vmatpush1.msra.mxu0 0.0
    %1005 = vmatprep.subr.mxu0 0.0
    %1006 = vmatpush1.msra.mxu0 0.0
    %1007 = vmatprep.subr.mxu0 0.0
    %1008 = vmatpush1.msra.mxu0 0.0
    %1009 = vmatprep.subr.mxu0 0.0
    %1010 = vmatpush1.msra.mxu0 0.0
    %1011 = vmatprep.subr.mxu0 0.0
    %1012 = vmatpush1.msra.mxu0 0.0
    %1013 = vmatprep.subr.mxu0 0.0
    %1014 = vmatpush1.msra.mxu0 0.0
    %1015 = vmatprep.subr.mxu0 0.0
    %1016 = vmatpush1.msra.mxu0 0.0
    %1017 = vmatprep.subr.mxu0 0.0
    %1018 = vmatpush1.msra.mxu0 0.0
    %1019 = vmatprep.subr.mxu0 0.0
    %1020 = vmatpush1.msra.mxu0 0.0
    %1021 = vmatprep.subr.mxu0 0.0
    %1022 = vmatpush1.msra.mxu0 0.0
    %1023 = vmatprep.subr.mxu0 0.0
    %1024 = vmatpush1.msra.mxu0 0.0
    %1025 = vmatprep.subr.mxu0 0.0
    %1026 = vmatpush1.msra.mxu0 0.0
    %1027 = vmatprep.mubr.f32.mxu0 0.0
    %v1028 = vand.u32 %v81, 4294901760
    %v1029 = vsub.f32 %v81, %v1028
    %v1030 = vand.u32 %v1029, 4294901760
    %1031 = vmatmul.mubr.f32.gmra.mrb[0].mxu0 %v1030
    %v1032 = vpop.f32.mrb[0].mxu0
    %v1033 = vadd.f32 %v949, %v1032
    %v1034 = vpop.f32.mrb[0].mxu0
    %v1035 = vadd.f32 %v951, %v1034
    %1036 = vdwg.mxu0
    %v1037 = vand.u32 %v42, 4294901760
    %v1038 = vsub.f32 %v42, %v1037
    %v1039 = vand.u32 %v1038, 4294901760
    %1040 = vmatprep.subr.mxu0 %v1039
    %v1041 = vand.u32 %v41, 4294901760
    %v1042 = vsub.f32 %v41, %v1041
    %v1043 = vand.u32 %v1042, 4294901760
    %1044 = vmatpush1.msra.mxu0 %v1043
    %v1045 = vand.u32 %v50, 4294901760
    %v1046 = vsub.f32 %v50, %v1045
    %v1047 = vand.u32 %v1046, 4294901760
    %1048 = vmatprep.subr.mxu0 %v1047
    %v1049 = vand.u32 %v49, 4294901760
    %v1050 = vsub.f32 %v49, %v1049
    %v1051 = vand.u32 %v1050, 4294901760
    %1052 = vmatpush1.msra.mxu0 %v1051
    %v1053 = vand.u32 %v58, 4294901760
    %v1054 = vsub.f32 %v58, %v1053
    %v1055 = vand.u32 %v1054, 4294901760
    %1056 = vmatprep.subr.mxu0 %v1055
    %v1057 = vand.u32 %v57, 4294901760
    %v1058 = vsub.f32 %v57, %v1057
    %v1059 = vand.u32 %v1058, 4294901760
    %1060 = vmatpush1.msra.mxu0 %v1059
    %v1061 = vand.u32 %v66, 4294901760
    %v1062 = vsub.f32 %v66, %v1061
    %v1063 = vand.u32 %v1062, 4294901760
    %1064 = vmatprep.subr.mxu0 %v1063
    %v1065 = vand.u32 %v65, 4294901760
    %v1066 = vsub.f32 %v65, %v1065
    %v1067 = vand.u32 %v1066, 4294901760
    %1068 = vmatpush1.msra.mxu0 %v1067
    %v1069 = vand.u32 %v74, 4294901760
    %v1070 = vsub.f32 %v74, %v1069
    %v1071 = vand.u32 %v1070, 4294901760
    %1072 = vmatprep.subr.mxu0 %v1071
    %v1073 = vand.u32 %v73, 4294901760
    %v1074 = vsub.f32 %v73, %v1073
    %v1075 = vand.u32 %v1074, 4294901760
    %1076 = vmatpush1.msra.mxu0 %v1075
    %1077 = vmatprep.subr.mxu0 0.0
    %1078 = vmatpush1.msra.mxu0 0.0
    %1079 = vmatprep.subr.mxu0 0.0
    %1080 = vmatpush1.msra.mxu0 0.0
    %1081 = vmatprep.subr.mxu0 0.0
    %1082 = vmatpush1.msra.mxu0 0.0
    %1083 = vmatprep.subr.mxu0 0.0
    %1084 = vmatpush1.msra.mxu0 0.0
    %1085 = vmatprep.subr.mxu0 0.0
    %1086 = vmatpush1.msra.mxu0 0.0
    %1087 = vmatprep.subr.mxu0 0.0
    %1088 = vmatpush1.msra.mxu0 0.0
    %1089 = vmatprep.subr.mxu0 0.0
    %1090 = vmatpush1.msra.mxu0 0.0
    %1091 = vmatprep.subr.mxu0 0.0
    %1092 = vmatpush1.msra.mxu0 0.0
    %1093 = vmatprep.subr.mxu0 0.0
    %1094 = vmatpush1.msra.mxu0 0.0
    %1095 = vmatprep.subr.mxu0 0.0
    %1096 = vmatpush1.msra.mxu0 0.0
    %1097 = vmatprep.subr.mxu0 0.0
    %1098 = vmatpush1.msra.mxu0 0.0
    %1099 = vmatprep.subr.mxu0 0.0
    %1100 = vmatpush1.msra.mxu0 0.0
    %1101 = vmatprep.subr.mxu0 0.0
    %1102 = vmatpush1.msra.mxu0 0.0
    %1103 = vmatprep.subr.mxu0 0.0
    %1104 = vmatpush1.msra.mxu0 0.0
    %1105 = vmatprep.subr.mxu0 0.0
    %1106 = vmatpush1.msra.mxu0 0.0
    %1107 = vmatprep.subr.mxu0 0.0
    %1108 = vmatpush1.msra.mxu0 0.0
    %1109 = vmatprep.subr.mxu0 0.0
    %1110 = vmatpush1.msra.mxu0 0.0
    %1111 = vmatprep.subr.mxu0 0.0
    %1112 = vmatpush1.msra.mxu0 0.0
    %1113 = vmatprep.subr.mxu0 0.0
    %1114 = vmatpush1.msra.mxu0 0.0
    %1115 = vmatprep.subr.mxu0 0.0
    %1116 = vmatpush1.msra.mxu0 0.0
    %1117 = vmatprep.subr.mxu0 0.0
    %1118 = vmatpush1.msra.mxu0 0.0
    %1119 = vmatprep.subr.mxu0 0.0
    %1120 = vmatpush1.msra.mxu0 0.0
    %1121 = vmatprep.subr.mxu0 0.0
    %1122 = vmatpush1.msra.mxu0 0.0
    %1123 = vmatprep.subr.mxu0 0.0
    %1124 = vmatpush1.msra.mxu0 0.0
    %1125 = vmatprep.subr.mxu0 0.0
    %1126 = vmatpush1.msra.mxu0 0.0
    %1127 = vmatprep.subr.mxu0 0.0
    %1128 = vmatpush1.msra.mxu0 0.0
    %1129 = vmatprep.subr.mxu0 0.0
    %1130 = vmatpush1.msra.mxu0 0.0
    %1131 = vmatprep.mubr.f32.mxu0 0.0
    %v1132 = vand.u32 %v81, 4294901760
    %1133 = vmatmul.mubr.f32.gmra.mrb[0].mxu0 %v1132
    %v1134 = vpop.f32.mrb[0].mxu0
    %v1135 = vadd.f32 %v1033, %v1134
    %v1136 = vpop.f32.mrb[0].mxu0
    %v1137 = vadd.f32 %v1035, %v1136
    %1138 = vdwg.mxu0
    %v1139 = vand.u32 %v42, 4294901760
    %1140 = vmatprep.subr.mxu0 %v1139
    %v1141 = vand.u32 %v41, 4294901760
    %1142 = vmatpush1.msra.mxu0 %v1141
    %v1143 = vand.u32 %v50, 4294901760
    %1144 = vmatprep.subr.mxu0 %v1143
    %v1145 = vand.u32 %v49, 4294901760
    %1146 = vmatpush1.msra.mxu0 %v1145
    %v1147 = vand.u32 %v58, 4294901760
    %1148 = vmatprep.subr.mxu0 %v1147
    %v1149 = vand.u32 %v57, 4294901760
    %1150 = vmatpush1.msra.mxu0 %v1149
    %v1151 = vand.u32 %v66, 4294901760
    %1152 = vmatprep.subr.mxu0 %v1151
    %v1153 = vand.u32 %v65, 4294901760
    %1154 = vmatpush1.msra.mxu0 %v1153
    %v1155 = vand.u32 %v74, 4294901760
    %1156 = vmatprep.subr.mxu0 %v1155
    %v1157 = vand.u32 %v73, 4294901760
    %1158 = vmatpush1.msra.mxu0 %v1157
    %1159 = vmatprep.subr.mxu0 0.0
    %1160 = vmatpush1.msra.mxu0 0.0
    %1161 = vmatprep.subr.mxu0 0.0
    %1162 = vmatpush1.msra.mxu0 0.0
    %1163 = vmatprep.subr.mxu0 0.0
    %1164 = vmatpush1.msra.mxu0 0.0
    %1165 = vmatprep.subr.mxu0 0.0
    %1166 = vmatpush1.msra.mxu0 0.0
    %1167 = vmatprep.subr.mxu0 0.0
    %1168 = vmatpush1.msra.mxu0 0.0
    %1169 = vmatprep.subr.mxu0 0.0
    %1170 = vmatpush1.msra.mxu0 0.0
    %1171 = vmatprep.subr.mxu0 0.0
    %1172 = vmatpush1.msra.mxu0 0.0
    %1173 = vmatprep.subr.mxu0 0.0
    %1174 = vmatpush1.msra.mxu0 0.0
    %1175 = vmatprep.subr.mxu0 0.0
    %1176 = vmatpush1.msra.mxu0 0.0
    %1177 = vmatprep.subr.mxu0 0.0
    %1178 = vmatpush1.msra.mxu0 0.0
    %1179 = vmatprep.subr.mxu0 0.0
    %1180 = vmatpush1.msra.mxu0 0.0
    %1181 = vmatprep.subr.mxu0 0.0
    %1182 = vmatpush1.msra.mxu0 0.0
    %1183 = vmatprep.subr.mxu0 0.0
    %1184 = vmatpush1.msra.mxu0 0.0
    %1185 = vmatprep.subr.mxu0 0.0
    %1186 = vmatpush1.msra.mxu0 0.0
    %1187 = vmatprep.subr.mxu0 0.0
    %1188 = vmatpush1.msra.mxu0 0.0
    %1189 = vmatprep.subr.mxu0 0.0
    %1190 = vmatpush1.msra.mxu0 0.0
    %1191 = vmatprep.subr.mxu0 0.0
    %1192 = vmatpush1.msra.mxu0 0.0
    %1193 = vmatprep.subr.mxu0 0.0
    %1194 = vmatpush1.msra.mxu0 0.0
    %1195 = vmatprep.subr.mxu0 0.0
    %1196 = vmatpush1.msra.mxu0 0.0
    %1197 = vmatprep.subr.mxu0 0.0
    %1198 = vmatpush1.msra.mxu0 0.0
    %1199 = vmatprep.subr.mxu0 0.0
    %1200 = vmatpush1.msra.mxu0 0.0
    %1201 = vmatprep.subr.mxu0 0.0
    %1202 = vmatpush1.msra.mxu0 0.0
    %1203 = vmatprep.subr.mxu0 0.0
    %1204 = vmatpush1.msra.mxu0 0.0
    %1205 = vmatprep.subr.mxu0 0.0
    %1206 = vmatpush1.msra.mxu0 0.0
    %1207 = vmatprep.subr.mxu0 0.0
    %1208 = vmatpush1.msra.mxu0 0.0
    %1209 = vmatprep.subr.mxu0 0.0
    %1210 = vmatpush1.msra.mxu0 0.0
    %1211 = vmatprep.subr.mxu0 0.0
    %1212 = vmatpush1.msra.mxu0 0.0
    %1213 = vmatprep.mubr.f32.mxu0 0.0
    %v1214 = vand.u32 %v81, 4294901760
    %1215 = vmatmul.mubr.f32.gmra.mrb[0].mxu0 %v1214
    %v1216 = vpop.f32.mrb[0].mxu0
    %v1217 = vadd.f32 %v1135, %v1216
    %v1218 = vpop.f32.mrb[0].mxu0
    %v1219 = vadd.f32 %v1137, %v1218
    %1220 = vdwg.mxu0
    %v1221 = vand.u32 %v44, 4294901760
    %1222 = vmatprep.subr.mxu0 %v1221
    %v1223 = vand.u32 %v43, 4294901760
    %1224 = vmatpush1.msra.mxu0 %v1223
    %v1225 = vand.u32 %v52, 4294901760
    %1226 = vmatprep.subr.mxu0 %v1225
    %v1227 = vand.u32 %v51, 4294901760
    %1228 = vmatpush1.msra.mxu0 %v1227
    %v1229 = vand.u32 %v60, 4294901760
    %1230 = vmatprep.subr.mxu0 %v1229
    %v1231 = vand.u32 %v59, 4294901760
    %1232 = vmatpush1.msra.mxu0 %v1231
    %v1233 = vand.u32 %v68, 4294901760
    %1234 = vmatprep.subr.mxu0 %v1233
    %v1235 = vand.u32 %v67, 4294901760
    %1236 = vmatpush1.msra.mxu0 %v1235
    %v1237 = vand.u32 %v76, 4294901760
    %1238 = vmatprep.subr.mxu0 %v1237
    %v1239 = vand.u32 %v75, 4294901760
    %1240 = vmatpush1.msra.mxu0 %v1239
    %1241 = vmatprep.subr.mxu0 0.0
    %1242 = vmatpush1.msra.mxu0 0.0
    %1243 = vmatprep.subr.mxu0 0.0
    %1244 = vmatpush1.msra.mxu0 0.0
    %1245 = vmatprep.subr.mxu0 0.0
    %1246 = vmatpush1.msra.mxu0 0.0
    %1247 = vmatprep.subr.mxu0 0.0
    %1248 = vmatpush1.msra.mxu0 0.0
    %1249 = vmatprep.subr.mxu0 0.0
    %1250 = vmatpush1.msra.mxu0 0.0
    %1251 = vmatprep.subr.mxu0 0.0
    %1252 = vmatpush1.msra.mxu0 0.0
    %1253 = vmatprep.subr.mxu0 0.0
    %1254 = vmatpush1.msra.mxu0 0.0
    %1255 = vmatprep.subr.mxu0 0.0
    %1256 = vmatpush1.msra.mxu0 0.0
    %1257 = vmatprep.subr.mxu0 0.0
    %1258 = vmatpush1.msra.mxu0 0.0
    %1259 = vmatprep.subr.mxu0 0.0
    %1260 = vmatpush1.msra.mxu0 0.0
    %1261 = vmatprep.subr.mxu0 0.0
    %1262 = vmatpush1.msra.mxu0 0.0
    %1263 = vmatprep.subr.mxu0 0.0
    %1264 = vmatpush1.msra.mxu0 0.0
    %1265 = vmatprep.subr.mxu0 0.0
    %1266 = vmatpush1.msra.mxu0 0.0
    %1267 = vmatprep.subr.mxu0 0.0
    %1268 = vmatpush1.msra.mxu0 0.0
    %1269 = vmatprep.subr.mxu0 0.0
    %1270 = vmatpush1.msra.mxu0 0.0
    %1271 = vmatprep.subr.mxu0 0.0
    %1272 = vmatpush1.msra.mxu0 0.0
    %1273 = vmatprep.subr.mxu0 0.0
    %1274 = vmatpush1.msra.mxu0 0.0
    %1275 = vmatprep.subr.mxu0 0.0
    %1276 = vmatpush1.msra.mxu0 0.0
    %1277 = vmatprep.subr.mxu0 0.0
    %1278 = vmatpush1.msra.mxu0 0.0
    %1279 = vmatprep.subr.mxu0 0.0
    %1280 = vmatpush1.msra.mxu0 0.0
    %1281 = vmatprep.subr.mxu0 0.0
    %1282 = vmatpush1.msra.mxu0 0.0
    %1283 = vmatprep.subr.mxu0 0.0
    %1284 = vmatpush1.msra.mxu0 0.0
    %1285 = vmatprep.subr.mxu0 0.0
    %1286 = vmatpush1.msra.mxu0 0.0
    %1287 = vmatprep.subr.mxu0 0.0
    %1288 = vmatpush1.msra.mxu0 0.0
    %1289 = vmatprep.subr.mxu0 0.0
    %1290 = vmatpush1.msra.mxu0 0.0
    %1291 = vmatprep.subr.mxu0 0.0
    %1292 = vmatpush1.msra.mxu0 0.0
    %1293 = vmatprep.subr.mxu0 0.0
    %1294 = vmatpush1.msra.mxu0 0.0
    %1295 = vmatprep.mubr.f32.mxu0 0.0
    %v1296 = vand.u32 %v81, 4294901760
    %v1297 = vsub.f32 %v81, %v1296
    %v1298 = vand.u32 %v1297, 4294901760
    %v1299 = vsub.f32 %v1297, %v1298
    %v1300 = vand.u32 %v1299, 4294901760
    %1301 = vmatmul.mubr.f32.gmra.mrb[0].mxu0 %v1300
    %v1302 = vpop.f32.mrb[0].mxu0
    %v1303 = vadd.f32 0.0, %v1302
    %v1304 = vpop.f32.mrb[0].mxu0
    %v1305 = vadd.f32 0.0, %v1304
    %1306 = vdwg.mxu0
    %v1307 = vand.u32 %v44, 4294901760
    %v1308 = vsub.f32 %v44, %v1307
    %v1309 = vand.u32 %v1308, 4294901760
    %v1310 = vsub.f32 %v1308, %v1309
    %v1311 = vand.u32 %v1310, 4294901760
    %1312 = vmatprep.subr.mxu0 %v1311
    %v1313 = vand.u32 %v43, 4294901760
    %v1314 = vsub.f32 %v43, %v1313
    %v1315 = vand.u32 %v1314, 4294901760
    %v1316 = vsub.f32 %v1314, %v1315
    %v1317 = vand.u32 %v1316, 4294901760
    %1318 = vmatpush1.msra.mxu0 %v1317
    %v1319 = vand.u32 %v52, 4294901760
    %v1320 = vsub.f32 %v52, %v1319
    %v1321 = vand.u32 %v1320, 4294901760
    %v1322 = vsub.f32 %v1320, %v1321
    %v1323 = vand.u32 %v1322, 4294901760
    %1324 = vmatprep.subr.mxu0 %v1323
    %v1325 = vand.u32 %v51, 4294901760
    %v1326 = vsub.f32 %v51, %v1325
    %v1327 = vand.u32 %v1326, 4294901760
    %v1328 = vsub.f32 %v1326, %v1327
    %v1329 = vand.u32 %v1328, 4294901760
    %1330 = vmatpush1.msra.mxu0 %v1329
    %v1331 = vand.u32 %v60, 4294901760
    %v1332 = vsub.f32 %v60, %v1331
    %v1333 = vand.u32 %v1332, 4294901760
    %v1334 = vsub.f32 %v1332, %v1333
    %v1335 = vand.u32 %v1334, 4294901760
    %1336 = vmatprep.subr.mxu0 %v1335
    %v1337 = vand.u32 %v59, 4294901760
    %v1338 = vsub.f32 %v59, %v1337
    %v1339 = vand.u32 %v1338, 4294901760
    %v1340 = vsub.f32 %v1338, %v1339
    %v1341 = vand.u32 %v1340, 4294901760
    %1342 = vmatpush1.msra.mxu0 %v1341
    %v1343 = vand.u32 %v68, 4294901760
    %v1344 = vsub.f32 %v68, %v1343
    %v1345 = vand.u32 %v1344, 4294901760
    %v1346 = vsub.f32 %v1344, %v1345
    %v1347 = vand.u32 %v1346, 4294901760
    %1348 = vmatprep.subr.mxu0 %v1347
    %v1349 = vand.u32 %v67, 4294901760
    %v1350 = vsub.f32 %v67, %v1349
    %v1351 = vand.u32 %v1350, 4294901760
    %v1352 = vsub.f32 %v1350, %v1351
    %v1353 = vand.u32 %v1352, 4294901760
    %1354 = vmatpush1.msra.mxu0 %v1353
    %v1355 = vand.u32 %v76, 4294901760
    %v1356 = vsub.f32 %v76, %v1355
    %v1357 = vand.u32 %v1356, 4294901760
    %v1358 = vsub.f32 %v1356, %v1357
    %v1359 = vand.u32 %v1358, 4294901760
    %1360 = vmatprep.subr.mxu0 %v1359
    %v1361 = vand.u32 %v75, 4294901760
    %v1362 = vsub.f32 %v75, %v1361
    %v1363 = vand.u32 %v1362, 4294901760
    %v1364 = vsub.f32 %v1362, %v1363
    %v1365 = vand.u32 %v1364, 4294901760
    %1366 = vmatpush1.msra.mxu0 %v1365
    %1367 = vmatprep.subr.mxu0 0.0
    %1368 = vmatpush1.msra.mxu0 0.0
    %1369 = vmatprep.subr.mxu0 0.0
    %1370 = vmatpush1.msra.mxu0 0.0
    %1371 = vmatprep.subr.mxu0 0.0
    %1372 = vmatpush1.msra.mxu0 0.0
    %1373 = vmatprep.subr.mxu0 0.0
    %1374 = vmatpush1.msra.mxu0 0.0
    %1375 = vmatprep.subr.mxu0 0.0
    %1376 = vmatpush1.msra.mxu0 0.0
    %1377 = vmatprep.subr.mxu0 0.0
    %1378 = vmatpush1.msra.mxu0 0.0
    %1379 = vmatprep.subr.mxu0 0.0
    %1380 = vmatpush1.msra.mxu0 0.0
    %1381 = vmatprep.subr.mxu0 0.0
    %1382 = vmatpush1.msra.mxu0 0.0
    %1383 = vmatprep.subr.mxu0 0.0
    %1384 = vmatpush1.msra.mxu0 0.0
    %1385 = vmatprep.subr.mxu0 0.0
    %1386 = vmatpush1.msra.mxu0 0.0
    %1387 = vmatprep.subr.mxu0 0.0
    %1388 = vmatpush1.msra.mxu0 0.0
    %1389 = vmatprep.subr.mxu0 0.0
    %1390 = vmatpush1.msra.mxu0 0.0
    %1391 = vmatprep.subr.mxu0 0.0
    %1392 = vmatpush1.msra.mxu0 0.0
    %1393 = vmatprep.subr.mxu0 0.0
    %1394 = vmatpush1.msra.mxu0 0.0
    %1395 = vmatprep.subr.mxu0 0.0
    %1396 = vmatpush1.msra.mxu0 0.0
    %1397 = vmatprep.subr.mxu0 0.0
    %1398 = vmatpush1.msra.mxu0 0.0
    %1399 = vmatprep.subr.mxu0 0.0
    %1400 = vmatpush1.msra.mxu0 0.0
    %1401 = vmatprep.subr.mxu0 0.0
    %1402 = vmatpush1.msra.mxu0 0.0
    %1403 = vmatprep.subr.mxu0 0.0
    %1404 = vmatpush1.msra.mxu0 0.0
    %1405 = vmatprep.subr.mxu0 0.0
    %1406 = vmatpush1.msra.mxu0 0.0
    %1407 = vmatprep.subr.mxu0 0.0
    %1408 = vmatpush1.msra.mxu0 0.0
    %1409 = vmatprep.subr.mxu0 0.0
    %1410 = vmatpush1.msra.mxu0 0.0
    %1411 = vmatprep.subr.mxu0 0.0
    %1412 = vmatpush1.msra.mxu0 0.0
    %1413 = vmatprep.subr.mxu0 0.0
    %1414 = vmatpush1.msra.mxu0 0.0
    %1415 = vmatprep.subr.mxu0 0.0
    %1416 = vmatpush1.msra.mxu0 0.0
    %1417 = vmatprep.subr.mxu0 0.0
    %1418 = vmatpush1.msra.mxu0 0.0
    %1419 = vmatprep.subr.mxu0 0.0
    %1420 = vmatpush1.msra.mxu0 0.0
    %1421 = vmatprep.mubr.f32.mxu0 0.0
    %v1422 = vand.u32 %v81, 4294901760
    %1423 = vmatmul.mubr.f32.gmra.mrb[0].mxu0 %v1422
    %v1424 = vpop.f32.mrb[0].mxu0
    %v1425 = vadd.f32 %v1303, %v1424
    %v1426 = vpop.f32.mrb[0].mxu0
    %v1427 = vadd.f32 %v1305, %v1426
    %1428 = vdwg.mxu0
    %v1429 = vand.u32 %v44, 4294901760
    %v1430 = vsub.f32 %v44, %v1429
    %1431 = vmatprep.subr.mxu0 %v1430
    %v1432 = vand.u32 %v43, 4294901760
    %v1433 = vsub.f32 %v43, %v1432
    %1434 = vmatpush1.msra.mxu0 %v1433
    %v1435 = vand.u32 %v52, 4294901760
    %v1436 = vsub.f32 %v52, %v1435
    %1437 = vmatprep.subr.mxu0 %v1436
    %v1438 = vand.u32 %v51, 4294901760
    %v1439 = vsub.f32 %v51, %v1438
    %1440 = vmatpush1.msra.mxu0 %v1439
    %v1441 = vand.u32 %v60, 4294901760
    %v1442 = vsub.f32 %v60, %v1441
    %1443 = vmatprep.subr.mxu0 %v1442
    %v1444 = vand.u32 %v59, 4294901760
    %v1445 = vsub.f32 %v59, %v1444
    %1446 = vmatpush1.msra.mxu0 %v1445
    %v1447 = vand.u32 %v68, 4294901760
    %v1448 = vsub.f32 %v68, %v1447
    %1449 = vmatprep.subr.mxu0 %v1448
    %v1450 = vand.u32 %v67, 4294901760
    %v1451 = vsub.f32 %v67, %v1450
    %1452 = vmatpush1.msra.mxu0 %v1451
    %v1453 = vand.u32 %v76, 4294901760
    %v1454 = vsub.f32 %v76, %v1453
    %1455 = vmatprep.subr.mxu0 %v1454
    %v1456 = vand.u32 %v75, 4294901760
    %v1457 = vsub.f32 %v75, %v1456
    %1458 = vmatpush1.msra.mxu0 %v1457
    %1459 = vmatprep.subr.mxu0 0.0
    %1460 = vmatpush1.msra.mxu0 0.0
    %1461 = vmatprep.subr.mxu0 0.0
    %1462 = vmatpush1.msra.mxu0 0.0
    %1463 = vmatprep.subr.mxu0 0.0
    %1464 = vmatpush1.msra.mxu0 0.0
    %1465 = vmatprep.subr.mxu0 0.0
    %1466 = vmatpush1.msra.mxu0 0.0
    %1467 = vmatprep.subr.mxu0 0.0
    %1468 = vmatpush1.msra.mxu0 0.0
    %1469 = vmatprep.subr.mxu0 0.0
    %1470 = vmatpush1.msra.mxu0 0.0
    %1471 = vmatprep.subr.mxu0 0.0
    %1472 = vmatpush1.msra.mxu0 0.0
    %1473 = vmatprep.subr.mxu0 0.0
    %1474 = vmatpush1.msra.mxu0 0.0
    %1475 = vmatprep.subr.mxu0 0.0
    %1476 = vmatpush1.msra.mxu0 0.0
    %1477 = vmatprep.subr.mxu0 0.0
    %1478 = vmatpush1.msra.mxu0 0.0
    %1479 = vmatprep.subr.mxu0 0.0
    %1480 = vmatpush1.msra.mxu0 0.0
    %1481 = vmatprep.subr.mxu0 0.0
    %1482 = vmatpush1.msra.mxu0 0.0
    %1483 = vmatprep.subr.mxu0 0.0
    %1484 = vmatpush1.msra.mxu0 0.0
    %1485 = vmatprep.subr.mxu0 0.0
    %1486 = vmatpush1.msra.mxu0 0.0
    %1487 = vmatprep.subr.mxu0 0.0
    %1488 = vmatpush1.msra.mxu0 0.0
    %1489 = vmatprep.subr.mxu0 0.0
    %1490 = vmatpush1.msra.mxu0 0.0
    %1491 = vmatprep.subr.mxu0 0.0
    %1492 = vmatpush1.msra.mxu0 0.0
    %1493 = vmatprep.subr.mxu0 0.0
    %1494 = vmatpush1.msra.mxu0 0.0
    %1495 = vmatprep.subr.mxu0 0.0
    %1496 = vmatpush1.msra.mxu0 0.0
    %1497 = vmatprep.subr.mxu0 0.0
    %1498 = vmatpush1.msra.mxu0 0.0
    %1499 = vmatprep.subr.mxu0 0.0
    %1500 = vmatpush1.msra.mxu0 0.0
    %1501 = vmatprep.subr.mxu0 0.0
    %1502 = vmatpush1.msra.mxu0 0.0
    %1503 = vmatprep.subr.mxu0 0.0
    %1504 = vmatpush1.msra.mxu0 0.0
    %1505 = vmatprep.subr.mxu0 0.0
    %1506 = vmatpush1.msra.mxu0 0.0
    %1507 = vmatprep.subr.mxu0 0.0
    %1508 = vmatpush1.msra.mxu0 0.0
    %1509 = vmatprep.subr.mxu0 0.0
    %1510 = vmatpush1.msra.mxu0 0.0
    %1511 = vmatprep.subr.mxu0 0.0
    %1512 = vmatpush1.msra.mxu0 0.0
    %1513 = vmatprep.mubr.f32.mxu0 0.0
    %v1514 = vand.u32 %v81, 4294901760
    %v1515 = vsub.f32 %v81, %v1514
    %1516 = vmatmul.mubr.f32.gmra.mrb[0].mxu0 %v1515
    %v1517 = vpop.f32.mrb[0].mxu0
    %v1518 = vadd.f32 %v1425, %v1517
    %v1519 = vpop.f32.mrb[0].mxu0
    %v1520 = vadd.f32 %v1427, %v1519
    %1521 = vdwg.mxu0
    %v1522 = vand.u32 %v44, 4294901760
    %1523 = vmatprep.subr.mxu0 %v1522
    %v1524 = vand.u32 %v43, 4294901760
    %1525 = vmatpush1.msra.mxu0 %v1524
    %v1526 = vand.u32 %v52, 4294901760
    %1527 = vmatprep.subr.mxu0 %v1526
    %v1528 = vand.u32 %v51, 4294901760
    %1529 = vmatpush1.msra.mxu0 %v1528
    %v1530 = vand.u32 %v60, 4294901760
    %1531 = vmatprep.subr.mxu0 %v1530
    %v1532 = vand.u32 %v59, 4294901760
    %1533 = vmatpush1.msra.mxu0 %v1532
    %v1534 = vand.u32 %v68, 4294901760
    %1535 = vmatprep.subr.mxu0 %v1534
    %v1536 = vand.u32 %v67, 4294901760
    %1537 = vmatpush1.msra.mxu0 %v1536
    %v1538 = vand.u32 %v76, 4294901760
    %1539 = vmatprep.subr.mxu0 %v1538
    %v1540 = vand.u32 %v75, 4294901760
    %1541 = vmatpush1.msra.mxu0 %v1540
    %1542 = vmatprep.subr.mxu0 0.0
    %1543 = vmatpush1.msra.mxu0 0.0
    %1544 = vmatprep.subr.mxu0 0.0
    %1545 = vmatpush1.msra.mxu0 0.0
    %1546 = vmatprep.subr.mxu0 0.0
    %1547 = vmatpush1.msra.mxu0 0.0
    %1548 = vmatprep.subr.mxu0 0.0
    %1549 = vmatpush1.msra.mxu0 0.0
    %1550 = vmatprep.subr.mxu0 0.0
    %1551 = vmatpush1.msra.mxu0 0.0
    %1552 = vmatprep.subr.mxu0 0.0
    %1553 = vmatpush1.msra.mxu0 0.0
    %1554 = vmatprep.subr.mxu0 0.0
    %1555 = vmatpush1.msra.mxu0 0.0
    %1556 = vmatprep.subr.mxu0 0.0
    %1557 = vmatpush1.msra.mxu0 0.0
    %1558 = vmatprep.subr.mxu0 0.0
    %1559 = vmatpush1.msra.mxu0 0.0
    %1560 = vmatprep.subr.mxu0 0.0
    %1561 = vmatpush1.msra.mxu0 0.0
    %1562 = vmatprep.subr.mxu0 0.0
    %1563 = vmatpush1.msra.mxu0 0.0
    %1564 = vmatprep.subr.mxu0 0.0
    %1565 = vmatpush1.msra.mxu0 0.0
    %1566 = vmatprep.subr.mxu0 0.0
    %1567 = vmatpush1.msra.mxu0 0.0
    %1568 = vmatprep.subr.mxu0 0.0
    %1569 = vmatpush1.msra.mxu0 0.0
    %1570 = vmatprep.subr.mxu0 0.0
    %1571 = vmatpush1.msra.mxu0 0.0
    %1572 = vmatprep.subr.mxu0 0.0
    %1573 = vmatpush1.msra.mxu0 0.0
    %1574 = vmatprep.subr.mxu0 0.0
    %1575 = vmatpush1.msra.mxu0 0.0
    %1576 = vmatprep.subr.mxu0 0.0
    %1577 = vmatpush1.msra.mxu0 0.0
    %1578 = vmatprep.subr.mxu0 0.0
    %1579 = vmatpush1.msra.mxu0 0.0
    %1580 = vmatprep.subr.mxu0 0.0
    %1581 = vmatpush1.msra.mxu0 0.0
    %1582 = vmatprep.subr.mxu0 0.0
    %1583 = vmatpush1.msra.mxu0 0.0
    %1584 = vmatprep.subr.mxu0 0.0
    %1585 = vmatpush1.msra.mxu0 0.0
    %1586 = vmatprep.subr.mxu0 0.0
    %1587 = vmatpush1.msra.mxu0 0.0
    %1588 = vmatprep.subr.mxu0 0.0
    %1589 = vmatpush1.msra.mxu0 0.0
    %1590 = vmatprep.subr.mxu0 0.0
    %1591 = vmatpush1.msra.mxu0 0.0
    %1592 = vmatprep.subr.mxu0 0.0
    %1593 = vmatpush1.msra.mxu0 0.0
    %1594 = vmatprep.subr.mxu0 0.0
    %1595 = vmatpush1.msra.mxu0 0.0
    %1596 = vmatprep.mubr.f32.mxu0 0.0
    %v1597 = vand.u32 %v81, 4294901760
    %v1598 = vsub.f32 %v81, %v1597
    %v1599 = vand.u32 %v1598, 4294901760
    %1600 = vmatmul.mubr.f32.gmra.mrb[0].mxu0 %v1599
    %v1601 = vpop.f32.mrb[0].mxu0
    %v1602 = vadd.f32 %v1518, %v1601
    %v1603 = vpop.f32.mrb[0].mxu0
    %v1604 = vadd.f32 %v1520, %v1603
    %1605 = vdwg.mxu0
    %v1606 = vand.u32 %v44, 4294901760
    %v1607 = vsub.f32 %v44, %v1606
    %v1608 = vand.u32 %v1607, 4294901760
    %1609 = vmatprep.subr.mxu0 %v1608
    %v1610 = vand.u32 %v43, 4294901760
    %v1611 = vsub.f32 %v43, %v1610
    %v1612 = vand.u32 %v1611, 4294901760
    %1613 = vmatpush1.msra.mxu0 %v1612
    %v1614 = vand.u32 %v52, 4294901760
    %v1615 = vsub.f32 %v52, %v1614
    %v1616 = vand.u32 %v1615, 4294901760
    %1617 = vmatprep.subr.mxu0 %v1616
    %v1618 = vand.u32 %v51, 4294901760
    %v1619 = vsub.f32 %v51, %v1618
    %v1620 = vand.u32 %v1619, 4294901760
    %1621 = vmatpush1.msra.mxu0 %v1620
    %v1622 = vand.u32 %v60, 4294901760
    %v1623 = vsub.f32 %v60, %v1622
    %v1624 = vand.u32 %v1623, 4294901760
    %1625 = vmatprep.subr.mxu0 %v1624
    %v1626 = vand.u32 %v59, 4294901760
    %v1627 = vsub.f32 %v59, %v1626
    %v1628 = vand.u32 %v1627, 4294901760
    %1629 = vmatpush1.msra.mxu0 %v1628
    %v1630 = vand.u32 %v68, 4294901760
    %v1631 = vsub.f32 %v68, %v1630
    %v1632 = vand.u32 %v1631, 4294901760
    %1633 = vmatprep.subr.mxu0 %v1632
    %v1634 = vand.u32 %v67, 4294901760
    %v1635 = vsub.f32 %v67, %v1634
    %v1636 = vand.u32 %v1635, 4294901760
    %1637 = vmatpush1.msra.mxu0 %v1636
    %v1638 = vand.u32 %v76, 4294901760
    %v1639 = vsub.f32 %v76, %v1638
    %v1640 = vand.u32 %v1639, 4294901760
    %1641 = vmatprep.subr.mxu0 %v1640
    %v1642 = vand.u32 %v75, 4294901760
    %v1643 = vsub.f32 %v75, %v1642
    %v1644 = vand.u32 %v1643, 4294901760
    %1645 = vmatpush1.msra.mxu0 %v1644
    %1646 = vmatprep.subr.mxu0 0.0
    %1647 = vmatpush1.msra.mxu0 0.0
    %1648 = vmatprep.subr.mxu0 0.0
    %1649 = vmatpush1.msra.mxu0 0.0
    %1650 = vmatprep.subr.mxu0 0.0
    %1651 = vmatpush1.msra.mxu0 0.0
    %1652 = vmatprep.subr.mxu0 0.0
    %1653 = vmatpush1.msra.mxu0 0.0
    %1654 = vmatprep.subr.mxu0 0.0
    %1655 = vmatpush1.msra.mxu0 0.0
    %1656 = vmatprep.subr.mxu0 0.0
    %1657 = vmatpush1.msra.mxu0 0.0
    %1658 = vmatprep.subr.mxu0 0.0
    %1659 = vmatpush1.msra.mxu0 0.0
    %1660 = vmatprep.subr.mxu0 0.0
    %1661 = vmatpush1.msra.mxu0 0.0
    %1662 = vmatprep.subr.mxu0 0.0
    %1663 = vmatpush1.msra.mxu0 0.0
    %1664 = vmatprep.subr.mxu0 0.0
    %1665 = vmatpush1.msra.mxu0 0.0
    %1666 = vmatprep.subr.mxu0 0.0
    %1667 = vmatpush1.msra.mxu0 0.0
    %1668 = vmatprep.subr.mxu0 0.0
    %1669 = vmatpush1.msra.mxu0 0.0
    %1670 = vmatprep.subr.mxu0 0.0
    %1671 = vmatpush1.msra.mxu0 0.0
    %1672 = vmatprep.subr.mxu0 0.0
    %1673 = vmatpush1.msra.mxu0 0.0
    %1674 = vmatprep.subr.mxu0 0.0
    %1675 = vmatpush1.msra.mxu0 0.0
    %1676 = vmatprep.subr.mxu0 0.0
    %1677 = vmatpush1.msra.mxu0 0.0
    %1678 = vmatprep.subr.mxu0 0.0
    %1679 = vmatpush1.msra.mxu0 0.0
    %1680 = vmatprep.subr.mxu0 0.0
    %1681 = vmatpush1.msra.mxu0 0.0
    %1682 = vmatprep.subr.mxu0 0.0
    %1683 = vmatpush1.msra.mxu0 0.0
    %1684 = vmatprep.subr.mxu0 0.0
    %1685 = vmatpush1.msra.mxu0 0.0
    %1686 = vmatprep.subr.mxu0 0.0
    %1687 = vmatpush1.msra.mxu0 0.0
    %1688 = vmatprep.subr.mxu0 0.0
    %1689 = vmatpush1.msra.mxu0 0.0
    %1690 = vmatprep.subr.mxu0 0.0
    %1691 = vmatpush1.msra.mxu0 0.0
    %1692 = vmatprep.subr.mxu0 0.0
    %1693 = vmatpush1.msra.mxu0 0.0
    %1694 = vmatprep.subr.mxu0 0.0
    %1695 = vmatpush1.msra.mxu0 0.0
    %1696 = vmatprep.subr.mxu0 0.0
    %1697 = vmatpush1.msra.mxu0 0.0
    %1698 = vmatprep.subr.mxu0 0.0
    %1699 = vmatpush1.msra.mxu0 0.0
    %1700 = vmatprep.mubr.f32.mxu0 0.0
    %v1701 = vand.u32 %v81, 4294901760
    %1702 = vmatmul.mubr.f32.gmra.mrb[0].mxu0 %v1701
    %v1703 = vpop.f32.mrb[0].mxu0
    %v1704 = vadd.f32 %v1602, %v1703
    %v1705 = vpop.f32.mrb[0].mxu0
    %v1706 = vadd.f32 %v1604, %v1705
    %1707 = vdwg.mxu0
    %v1708 = vand.u32 %v44, 4294901760
    %1709 = vmatprep.subr.mxu0 %v1708
    %v1710 = vand.u32 %v43, 4294901760
    %1711 = vmatpush1.msra.mxu0 %v1710
    %v1712 = vand.u32 %v52, 4294901760
    %1713 = vmatprep.subr.mxu0 %v1712
    %v1714 = vand.u32 %v51, 4294901760
    %1715 = vmatpush1.msra.mxu0 %v1714
    %v1716 = vand.u32 %v60, 4294901760
    %1717 = vmatprep.subr.mxu0 %v1716
    %v1718 = vand.u32 %v59, 4294901760
    %1719 = vmatpush1.msra.mxu0 %v1718
    %v1720 = vand.u32 %v68, 4294901760
    %1721 = vmatprep.subr.mxu0 %v1720
    %v1722 = vand.u32 %v67, 4294901760
    %1723 = vmatpush1.msra.mxu0 %v1722
    %v1724 = vand.u32 %v76, 4294901760
    %1725 = vmatprep.subr.mxu0 %v1724
    %v1726 = vand.u32 %v75, 4294901760
    %1727 = vmatpush1.msra.mxu0 %v1726
    %1728 = vmatprep.subr.mxu0 0.0
    %1729 = vmatpush1.msra.mxu0 0.0
    %1730 = vmatprep.subr.mxu0 0.0
    %1731 = vmatpush1.msra.mxu0 0.0
    %1732 = vmatprep.subr.mxu0 0.0
    %1733 = vmatpush1.msra.mxu0 0.0
    %1734 = vmatprep.subr.mxu0 0.0
    %1735 = vmatpush1.msra.mxu0 0.0
    %1736 = vmatprep.subr.mxu0 0.0
    %1737 = vmatpush1.msra.mxu0 0.0
    %1738 = vmatprep.subr.mxu0 0.0
    %1739 = vmatpush1.msra.mxu0 0.0
    %1740 = vmatprep.subr.mxu0 0.0
    %1741 = vmatpush1.msra.mxu0 0.0
    %1742 = vmatprep.subr.mxu0 0.0
    %1743 = vmatpush1.msra.mxu0 0.0
    %1744 = vmatprep.subr.mxu0 0.0
    %1745 = vmatpush1.msra.mxu0 0.0
    %1746 = vmatprep.subr.mxu0 0.0
    %1747 = vmatpush1.msra.mxu0 0.0
    %1748 = vmatprep.subr.mxu0 0.0
    %1749 = vmatpush1.msra.mxu0 0.0
    %1750 = vmatprep.subr.mxu0 0.0
    %1751 = vmatpush1.msra.mxu0 0.0
    %1752 = vmatprep.subr.mxu0 0.0
    %1753 = vmatpush1.msra.mxu0 0.0
    %1754 = vmatprep.subr.mxu0 0.0
    %1755 = vmatpush1.msra.mxu0 0.0
    %1756 = vmatprep.subr.mxu0 0.0
    %1757 = vmatpush1.msra.mxu0 0.0
    %1758 = vmatprep.subr.mxu0 0.0
    %1759 = vmatpush1.msra.mxu0 0.0
    %1760 = vmatprep.subr.mxu0 0.0
    %1761 = vmatpush1.msra.mxu0 0.0
    %1762 = vmatprep.subr.mxu0 0.0
    %1763 = vmatpush1.msra.mxu0 0.0
    %1764 = vmatprep.subr.mxu0 0.0
    %1765 = vmatpush1.msra.mxu0 0.0
    %1766 = vmatprep.subr.mxu0 0.0
    %1767 = vmatpush1.msra.mxu0 0.0
    %1768 = vmatprep.subr.mxu0 0.0
    %1769 = vmatpush1.msra.mxu0 0.0
    %1770 = vmatprep.subr.mxu0 0.0
    %1771 = vmatpush1.msra.mxu0 0.0
    %1772 = vmatprep.subr.mxu0 0.0
    %1773 = vmatpush1.msra.mxu0 0.0
    %1774 = vmatprep.subr.mxu0 0.0
    %1775 = vmatpush1.msra.mxu0 0.0
    %1776 = vmatprep.subr.mxu0 0.0
    %1777 = vmatpush1.msra.mxu0 0.0
    %1778 = vmatprep.subr.mxu0 0.0
    %1779 = vmatpush1.msra.mxu0 0.0
    %1780 = vmatprep.subr.mxu0 0.0
    %1781 = vmatpush1.msra.mxu0 0.0
    %1782 = vmatprep.mubr.f32.mxu0 0.0
    %v1783 = vand.u32 %v81, 4294901760
    %1784 = vmatmul.mubr.f32.gmra.mrb[0].mxu0 %v1783
    %v1785 = vpop.f32.mrb[0].mxu0
    %v1786 = vadd.f32 %v1704, %v1785
    %v1787 = vpop.f32.mrb[0].mxu0
    %v1788 = vadd.f32 %v1706, %v1787
    %1789 = vdwg.mxu0
    %v1790 = vand.u32 %v46, 4294901760
    %1791 = vmatprep.subr.mxu0 %v1790
    %v1792 = vand.u32 %v45, 4294901760
    %1793 = vmatpush1.msra.mxu0 %v1792
    %v1794 = vand.u32 %v54, 4294901760
    %1795 = vmatprep.subr.mxu0 %v1794
    %v1796 = vand.u32 %v53, 4294901760
    %1797 = vmatpush1.msra.mxu0 %v1796
    %v1798 = vand.u32 %v62, 4294901760
    %1799 = vmatprep.subr.mxu0 %v1798
    %v1800 = vand.u32 %v61, 4294901760
    %1801 = vmatpush1.msra.mxu0 %v1800
    %v1802 = vand.u32 %v70, 4294901760
    %1803 = vmatprep.subr.mxu0 %v1802
    %v1804 = vand.u32 %v69, 4294901760
    %1805 = vmatpush1.msra.mxu0 %v1804
    %v1806 = vand.u32 %v78, 4294901760
    %1807 = vmatprep.subr.mxu0 %v1806
    %v1808 = vand.u32 %v77, 4294901760
    %1809 = vmatpush1.msra.mxu0 %v1808
    %1810 = vmatprep.subr.mxu0 0.0
    %1811 = vmatpush1.msra.mxu0 0.0
    %1812 = vmatprep.subr.mxu0 0.0
    %1813 = vmatpush1.msra.mxu0 0.0
    %1814 = vmatprep.subr.mxu0 0.0
    %1815 = vmatpush1.msra.mxu0 0.0
    %1816 = vmatprep.subr.mxu0 0.0
    %1817 = vmatpush1.msra.mxu0 0.0
    %1818 = vmatprep.subr.mxu0 0.0
    %1819 = vmatpush1.msra.mxu0 0.0
    %1820 = vmatprep.subr.mxu0 0.0
    %1821 = vmatpush1.msra.mxu0 0.0
    %1822 = vmatprep.subr.mxu0 0.0
    %1823 = vmatpush1.msra.mxu0 0.0
    %1824 = vmatprep.subr.mxu0 0.0
    %1825 = vmatpush1.msra.mxu0 0.0
    %1826 = vmatprep.subr.mxu0 0.0
    %1827 = vmatpush1.msra.mxu0 0.0
    %1828 = vmatprep.subr.mxu0 0.0
    %1829 = vmatpush1.msra.mxu0 0.0
    %1830 = vmatprep.subr.mxu0 0.0
    %1831 = vmatpush1.msra.mxu0 0.0
    %1832 = vmatprep.subr.mxu0 0.0
    %1833 = vmatpush1.msra.mxu0 0.0
    %1834 = vmatprep.subr.mxu0 0.0
    %1835 = vmatpush1.msra.mxu0 0.0
    %1836 = vmatprep.subr.mxu0 0.0
    %1837 = vmatpush1.msra.mxu0 0.0
    %1838 = vmatprep.subr.mxu0 0.0
    %1839 = vmatpush1.msra.mxu0 0.0
    %1840 = vmatprep.subr.mxu0 0.0
    %1841 = vmatpush1.msra.mxu0 0.0
    %1842 = vmatprep.subr.mxu0 0.0
    %1843 = vmatpush1.msra.mxu0 0.0
    %1844 = vmatprep.subr.mxu0 0.0
    %1845 = vmatpush1.msra.mxu0 0.0
    %1846 = vmatprep.subr.mxu0 0.0
    %1847 = vmatpush1.msra.mxu0 0.0
    %1848 = vmatprep.subr.mxu0 0.0
    %1849 = vmatpush1.msra.mxu0 0.0
    %1850 = vmatprep.subr.mxu0 0.0
    %1851 = vmatpush1.msra.mxu0 0.0
    %1852 = vmatprep.subr.mxu0 0.0
    %1853 = vmatpush1.msra.mxu0 0.0
    %1854 = vmatprep.subr.mxu0 0.0
    %1855 = vmatpush1.msra.mxu0 0.0
    %1856 = vmatprep.subr.mxu0 0.0
    %1857 = vmatpush1.msra.mxu0 0.0
    %1858 = vmatprep.subr.mxu0 0.0
    %1859 = vmatpush1.msra.mxu0 0.0
    %1860 = vmatprep.subr.mxu0 0.0
    %1861 = vmatpush1.msra.mxu0 0.0
    %1862 = vmatprep.subr.mxu0 0.0
    %1863 = vmatpush1.msra.mxu0 0.0
    %1864 = vmatprep.mubr.f32.mxu0 0.0
    %v1865 = vand.u32 %v81, 4294901760
    %v1866 = vsub.f32 %v81, %v1865
    %v1867 = vand.u32 %v1866, 4294901760
    %v1868 = vsub.f32 %v1866, %v1867
    %v1869 = vand.u32 %v1868, 4294901760
    %1870 = vmatmul.mubr.f32.gmra.mrb[0].mxu0 %v1869
    %v1871 = vpop.f32.mrb[0].mxu0
    %v1872 = vadd.f32 0.0, %v1871
    %v1873 = vpop.f32.mrb[0].mxu0
    %v1874 = vadd.f32 0.0, %v1873
    %1875 = vdwg.mxu0
    %v1876 = vand.u32 %v46, 4294901760
    %v1877 = vsub.f32 %v46, %v1876
    %v1878 = vand.u32 %v1877, 4294901760
    %v1879 = vsub.f32 %v1877, %v1878
    %v1880 = vand.u32 %v1879, 4294901760
    %1881 = vmatprep.subr.mxu0 %v1880
    %v1882 = vand.u32 %v45, 4294901760
    %v1883 = vsub.f32 %v45, %v1882
    %v1884 = vand.u32 %v1883, 4294901760
    %v1885 = vsub.f32 %v1883, %v1884
    %v1886 = vand.u32 %v1885, 4294901760
    %1887 = vmatpush1.msra.mxu0 %v1886
    %v1888 = vand.u32 %v54, 4294901760
    %v1889 = vsub.f32 %v54, %v1888
    %v1890 = vand.u32 %v1889, 4294901760
    %v1891 = vsub.f32 %v1889, %v1890
    %v1892 = vand.u32 %v1891, 4294901760
    %1893 = vmatprep.subr.mxu0 %v1892
    %v1894 = vand.u32 %v53, 4294901760
    %v1895 = vsub.f32 %v53, %v1894
    %v1896 = vand.u32 %v1895, 4294901760
    %v1897 = vsub.f32 %v1895, %v1896
    %v1898 = vand.u32 %v1897, 4294901760
    %1899 = vmatpush1.msra.mxu0 %v1898
    %v1900 = vand.u32 %v62, 4294901760
    %v1901 = vsub.f32 %v62, %v1900
    %v1902 = vand.u32 %v1901, 4294901760
    %v1903 = vsub.f32 %v1901, %v1902
    %v1904 = vand.u32 %v1903, 4294901760
    %1905 = vmatprep.subr.mxu0 %v1904
    %v1906 = vand.u32 %v61, 4294901760
    %v1907 = vsub.f32 %v61, %v1906
    %v1908 = vand.u32 %v1907, 4294901760
    %v1909 = vsub.f32 %v1907, %v1908
    %v1910 = vand.u32 %v1909, 4294901760
    %1911 = vmatpush1.msra.mxu0 %v1910
    %v1912 = vand.u32 %v70, 4294901760
    %v1913 = vsub.f32 %v70, %v1912
    %v1914 = vand.u32 %v1913, 4294901760
    %v1915 = vsub.f32 %v1913, %v1914
    %v1916 = vand.u32 %v1915, 4294901760
    %1917 = vmatprep.subr.mxu0 %v1916
    %v1918 = vand.u32 %v69, 4294901760
    %v1919 = vsub.f32 %v69, %v1918
    %v1920 = vand.u32 %v1919, 4294901760
    %v1921 = vsub.f32 %v1919, %v1920
    %v1922 = vand.u32 %v1921, 4294901760
    %1923 = vmatpush1.msra.mxu0 %v1922
    %v1924 = vand.u32 %v78, 4294901760
    %v1925 = vsub.f32 %v78, %v1924
    %v1926 = vand.u32 %v1925, 4294901760
    %v1927 = vsub.f32 %v1925, %v1926
    %v1928 = vand.u32 %v1927, 4294901760
    %1929 = vmatprep.subr.mxu0 %v1928
    %v1930 = vand.u32 %v77, 4294901760
    %v1931 = vsub.f32 %v77, %v1930
    %v1932 = vand.u32 %v1931, 4294901760
    %v1933 = vsub.f32 %v1931, %v1932
    %v1934 = vand.u32 %v1933, 4294901760
    %1935 = vmatpush1.msra.mxu0 %v1934
    %1936 = vmatprep.subr.mxu0 0.0
    %1937 = vmatpush1.msra.mxu0 0.0
    %1938 = vmatprep.subr.mxu0 0.0
    %1939 = vmatpush1.msra.mxu0 0.0
    %1940 = vmatprep.subr.mxu0 0.0
    %1941 = vmatpush1.msra.mxu0 0.0
    %1942 = vmatprep.subr.mxu0 0.0
    %1943 = vmatpush1.msra.mxu0 0.0
    %1944 = vmatprep.subr.mxu0 0.0
    %1945 = vmatpush1.msra.mxu0 0.0
    %1946 = vmatprep.subr.mxu0 0.0
    %1947 = vmatpush1.msra.mxu0 0.0
    %1948 = vmatprep.subr.mxu0 0.0
    %1949 = vmatpush1.msra.mxu0 0.0
    %1950 = vmatprep.subr.mxu0 0.0
    %1951 = vmatpush1.msra.mxu0 0.0
    %1952 = vmatprep.subr.mxu0 0.0
    %1953 = vmatpush1.msra.mxu0 0.0
    %1954 = vmatprep.subr.mxu0 0.0
    %1955 = vmatpush1.msra.mxu0 0.0
    %1956 = vmatprep.subr.mxu0 0.0
    %1957 = vmatpush1.msra.mxu0 0.0
    %1958 = vmatprep.subr.mxu0 0.0
    %1959 = vmatpush1.msra.mxu0 0.0
    %1960 = vmatprep.subr.mxu0 0.0
    %1961 = vmatpush1.msra.mxu0 0.0
    %1962 = vmatprep.subr.mxu0 0.0
    %1963 = vmatpush1.msra.mxu0 0.0
    %1964 = vmatprep.subr.mxu0 0.0
    %1965 = vmatpush1.msra.mxu0 0.0
    %1966 = vmatprep.subr.mxu0 0.0
    %1967 = vmatpush1.msra.mxu0 0.0
    %1968 = vmatprep.subr.mxu0 0.0
    %1969 = vmatpush1.msra.mxu0 0.0
    %1970 = vmatprep.subr.mxu0 0.0
    %1971 = vmatpush1.msra.mxu0 0.0
    %1972 = vmatprep.subr.mxu0 0.0
    %1973 = vmatpush1.msra.mxu0 0.0
    %1974 = vmatprep.subr.mxu0 0.0
    %1975 = vmatpush1.msra.mxu0 0.0
    %1976 = vmatprep.subr.mxu0 0.0
    %1977 = vmatpush1.msra.mxu0 0.0
    %1978 = vmatprep.subr.mxu0 0.0
    %1979 = vmatpush1.msra.mxu0 0.0
    %1980 = vmatprep.subr.mxu0 0.0
    %1981 = vmatpush1.msra.mxu0 0.0
    %1982 = vmatprep.subr.mxu0 0.0
    %1983 = vmatpush1.msra.mxu0 0.0
    %1984 = vmatprep.subr.mxu0 0.0
    %1985 = vmatpush1.msra.mxu0 0.0
    %1986 = vmatprep.subr.mxu0 0.0
    %1987 = vmatpush1.msra.mxu0 0.0
    %1988 = vmatprep.subr.mxu0 0.0
    %1989 = vmatpush1.msra.mxu0 0.0
    %1990 = vmatprep.mubr.f32.mxu0 0.0
    %v1991 = vand.u32 %v81, 4294901760
    %1992 = vmatmul.mubr.f32.gmra.mrb[0].mxu0 %v1991
    %v1993 = vpop.f32.mrb[0].mxu0
    %v1994 = vadd.f32 %v1872, %v1993
    %v1995 = vpop.f32.mrb[0].mxu0
    %v1996 = vadd.f32 %v1874, %v1995
    %1997 = vdwg.mxu0
    %v1998 = vand.u32 %v46, 4294901760
    %v1999 = vsub.f32 %v46, %v1998
    %2000 = vmatprep.subr.mxu0 %v1999
    %v2001 = vand.u32 %v45, 4294901760
    %v2002 = vsub.f32 %v45, %v2001
    %2003 = vmatpush1.msra.mxu0 %v2002
    %v2004 = vand.u32 %v54, 4294901760
    %v2005 = vsub.f32 %v54, %v2004
    %2006 = vmatprep.subr.mxu0 %v2005
    %v2007 = vand.u32 %v53, 4294901760
    %v2008 = vsub.f32 %v53, %v2007
    %2009 = vmatpush1.msra.mxu0 %v2008
    %v2010 = vand.u32 %v62, 4294901760
    %v2011 = vsub.f32 %v62, %v2010
    %2012 = vmatprep.subr.mxu0 %v2011
    %v2013 = vand.u32 %v61, 4294901760
    %v2014 = vsub.f32 %v61, %v2013
    %2015 = vmatpush1.msra.mxu0 %v2014
    %v2016 = vand.u32 %v70, 4294901760
    %v2017 = vsub.f32 %v70, %v2016
    %2018 = vmatprep.subr.mxu0 %v2017
    %v2019 = vand.u32 %v69, 4294901760
    %v2020 = vsub.f32 %v69, %v2019
    %2021 = vmatpush1.msra.mxu0 %v2020
    %v2022 = vand.u32 %v78, 4294901760
    %v2023 = vsub.f32 %v78, %v2022
    %2024 = vmatprep.subr.mxu0 %v2023
    %v2025 = vand.u32 %v77, 4294901760
    %v2026 = vsub.f32 %v77, %v2025
    %2027 = vmatpush1.msra.mxu0 %v2026
    %2028 = vmatprep.subr.mxu0 0.0
    %2029 = vmatpush1.msra.mxu0 0.0
    %2030 = vmatprep.subr.mxu0 0.0
    %2031 = vmatpush1.msra.mxu0 0.0
    %2032 = vmatprep.subr.mxu0 0.0
    %2033 = vmatpush1.msra.mxu0 0.0
    %2034 = vmatprep.subr.mxu0 0.0
    %2035 = vmatpush1.msra.mxu0 0.0
    %2036 = vmatprep.subr.mxu0 0.0
    %2037 = vmatpush1.msra.mxu0 0.0
    %2038 = vmatprep.subr.mxu0 0.0
    %2039 = vmatpush1.msra.mxu0 0.0
    %2040 = vmatprep.subr.mxu0 0.0
    %2041 = vmatpush1.msra.mxu0 0.0
    %2042 = vmatprep.subr.mxu0 0.0
    %2043 = vmatpush1.msra.mxu0 0.0
    %2044 = vmatprep.subr.mxu0 0.0
    %2045 = vmatpush1.msra.mxu0 0.0
    %2046 = vmatprep.subr.mxu0 0.0
    %2047 = vmatpush1.msra.mxu0 0.0
    %2048 = vmatprep.subr.mxu0 0.0
    %2049 = vmatpush1.msra.mxu0 0.0
    %2050 = vmatprep.subr.mxu0 0.0
    %2051 = vmatpush1.msra.mxu0 0.0
    %2052 = vmatprep.subr.mxu0 0.0
    %2053 = vmatpush1.msra.mxu0 0.0
    %2054 = vmatprep.subr.mxu0 0.0
    %2055 = vmatpush1.msra.mxu0 0.0
    %2056 = vmatprep.subr.mxu0 0.0
    %2057 = vmatpush1.msra.mxu0 0.0
    %2058 = vmatprep.subr.mxu0 0.0
    %2059 = vmatpush1.msra.mxu0 0.0
    %2060 = vmatprep.subr.mxu0 0.0
    %2061 = vmatpush1.msra.mxu0 0.0
    %2062 = vmatprep.subr.mxu0 0.0
    %2063 = vmatpush1.msra.mxu0 0.0
    %2064 = vmatprep.subr.mxu0 0.0
    %2065 = vmatpush1.msra.mxu0 0.0
    %2066 = vmatprep.subr.mxu0 0.0
    %2067 = vmatpush1.msra.mxu0 0.0
    %2068 = vmatprep.subr.mxu0 0.0
    %2069 = vmatpush1.msra.mxu0 0.0
    %2070 = vmatprep.subr.mxu0 0.0
    %2071 = vmatpush1.msra.mxu0 0.0
    %2072 = vmatprep.subr.mxu0 0.0
    %2073 = vmatpush1.msra.mxu0 0.0
    %2074 = vmatprep.subr.mxu0 0.0
    %2075 = vmatpush1.msra.mxu0 0.0
    %2076 = vmatprep.subr.mxu0 0.0
    %2077 = vmatpush1.msra.mxu0 0.0
    %2078 = vmatprep.subr.mxu0 0.0
    %2079 = vmatpush1.msra.mxu0 0.0
    %2080 = vmatprep.subr.mxu0 0.0
    %2081 = vmatpush1.msra.mxu0 0.0
    %2082 = vmatprep.mubr.f32.mxu0 0.0
    %v2083 = vand.u32 %v81, 4294901760
    %v2084 = vsub.f32 %v81, %v2083
    %2085 = vmatmul.mubr.f32.gmra.mrb[0].mxu0 %v2084
    %v2086 = vpop.f32.mrb[0].mxu0
    %v2087 = vadd.f32 %v1994, %v2086
    %v2088 = vpop.f32.mrb[0].mxu0
    %v2089 = vadd.f32 %v1996, %v2088
    %2090 = vdwg.mxu0
    %v2091 = vand.u32 %v46, 4294901760
    %2092 = vmatprep.subr.mxu0 %v2091
    %v2093 = vand.u32 %v45, 4294901760
    %2094 = vmatpush1.msra.mxu0 %v2093
    %v2095 = vand.u32 %v54, 4294901760
    %2096 = vmatprep.subr.mxu0 %v2095
    %v2097 = vand.u32 %v53, 4294901760
    %2098 = vmatpush1.msra.mxu0 %v2097
    %v2099 = vand.u32 %v62, 4294901760
    %2100 = vmatprep.subr.mxu0 %v2099
    %v2101 = vand.u32 %v61, 4294901760
    %2102 = vmatpush1.msra.mxu0 %v2101
    %v2103 = vand.u32 %v70, 4294901760
    %2104 = vmatprep.subr.mxu0 %v2103
    %v2105 = vand.u32 %v69, 4294901760
    %2106 = vmatpush1.msra.mxu0 %v2105
    %v2107 = vand.u32 %v78, 4294901760
    %2108 = vmatprep.subr.mxu0 %v2107
    %v2109 = vand.u32 %v77, 4294901760
    %2110 = vmatpush1.msra.mxu0 %v2109
    %2111 = vmatprep.subr.mxu0 0.0
    %2112 = vmatpush1.msra.mxu0 0.0
    %2113 = vmatprep.subr.mxu0 0.0
    %2114 = vmatpush1.msra.mxu0 0.0
    %2115 = vmatprep.subr.mxu0 0.0
    %2116 = vmatpush1.msra.mxu0 0.0
    %2117 = vmatprep.subr.mxu0 0.0
    %2118 = vmatpush1.msra.mxu0 0.0
    %2119 = vmatprep.subr.mxu0 0.0
    %2120 = vmatpush1.msra.mxu0 0.0
    %2121 = vmatprep.subr.mxu0 0.0
    %2122 = vmatpush1.msra.mxu0 0.0
    %2123 = vmatprep.subr.mxu0 0.0
    %2124 = vmatpush1.msra.mxu0 0.0
    %2125 = vmatprep.subr.mxu0 0.0
    %2126 = vmatpush1.msra.mxu0 0.0
    %2127 = vmatprep.subr.mxu0 0.0
    %2128 = vmatpush1.msra.mxu0 0.0
    %2129 = vmatprep.subr.mxu0 0.0
    %2130 = vmatpush1.msra.mxu0 0.0
    %2131 = vmatprep.subr.mxu0 0.0
    %2132 = vmatpush1.msra.mxu0 0.0
    %2133 = vmatprep.subr.mxu0 0.0
    %2134 = vmatpush1.msra.mxu0 0.0
    %2135 = vmatprep.subr.mxu0 0.0
    %2136 = vmatpush1.msra.mxu0 0.0
    %2137 = vmatprep.subr.mxu0 0.0
    %2138 = vmatpush1.msra.mxu0 0.0
    %2139 = vmatprep.subr.mxu0 0.0
    %2140 = vmatpush1.msra.mxu0 0.0
    %2141 = vmatprep.subr.mxu0 0.0
    %2142 = vmatpush1.msra.mxu0 0.0
    %2143 = vmatprep.subr.mxu0 0.0
    %2144 = vmatpush1.msra.mxu0 0.0
    %2145 = vmatprep.subr.mxu0 0.0
    %2146 = vmatpush1.msra.mxu0 0.0
    %2147 = vmatprep.subr.mxu0 0.0
    %2148 = vmatpush1.msra.mxu0 0.0
    %2149 = vmatprep.subr.mxu0 0.0
    %2150 = vmatpush1.msra.mxu0 0.0
    %2151 = vmatprep.subr.mxu0 0.0
    %2152 = vmatpush1.msra.mxu0 0.0
    %2153 = vmatprep.subr.mxu0 0.0
    %2154 = vmatpush1.msra.mxu0 0.0
    %2155 = vmatprep.subr.mxu0 0.0
    %2156 = vmatpush1.msra.mxu0 0.0
    %2157 = vmatprep.subr.mxu0 0.0
    %2158 = vmatpush1.msra.mxu0 0.0
    %2159 = vmatprep.subr.mxu0 0.0
    %2160 = vmatpush1.msra.mxu0 0.0
    %2161 = vmatprep.subr.mxu0 0.0
    %2162 = vmatpush1.msra.mxu0 0.0
    %2163 = vmatprep.subr.mxu0 0.0
    %2164 = vmatpush1.msra.mxu0 0.0
    %2165 = vmatprep.mubr.f32.mxu0 0.0
    %v2166 = vand.u32 %v81, 4294901760
    %v2167 = vsub.f32 %v81, %v2166
    %v2168 = vand.u32 %v2167, 4294901760
    %2169 = vmatmul.mubr.f32.gmra.mrb[0].mxu0 %v2168
    %v2170 = vpop.f32.mrb[0].mxu0
    %v2171 = vadd.f32 %v2087, %v2170
    %v2172 = vpop.f32.mrb[0].mxu0
    %v2173 = vadd.f32 %v2089, %v2172
    %2174 = vdwg.mxu0
    %v2175 = vand.u32 %v46, 4294901760
    %v2176 = vsub.f32 %v46, %v2175
    %v2177 = vand.u32 %v2176, 4294901760
    %2178 = vmatprep.subr.mxu0 %v2177
    %v2179 = vand.u32 %v45, 4294901760
    %v2180 = vsub.f32 %v45, %v2179
    %v2181 = vand.u32 %v2180, 4294901760
    %2182 = vmatpush1.msra.mxu0 %v2181
    %v2183 = vand.u32 %v54, 4294901760
    %v2184 = vsub.f32 %v54, %v2183
    %v2185 = vand.u32 %v2184, 4294901760
    %2186 = vmatprep.subr.mxu0 %v2185
    %v2187 = vand.u32 %v53, 4294901760
    %v2188 = vsub.f32 %v53, %v2187
    %v2189 = vand.u32 %v2188, 4294901760
    %2190 = vmatpush1.msra.mxu0 %v2189
    %v2191 = vand.u32 %v62, 4294901760
    %v2192 = vsub.f32 %v62, %v2191
    %v2193 = vand.u32 %v2192, 4294901760
    %2194 = vmatprep.subr.mxu0 %v2193
    %v2195 = vand.u32 %v61, 4294901760
    %v2196 = vsub.f32 %v61, %v2195
    %v2197 = vand.u32 %v2196, 4294901760
    %2198 = vmatpush1.msra.mxu0 %v2197
    %v2199 = vand.u32 %v70, 4294901760
    %v2200 = vsub.f32 %v70, %v2199
    %v2201 = vand.u32 %v2200, 4294901760
    %2202 = vmatprep.subr.mxu0 %v2201
    %v2203 = vand.u32 %v69, 4294901760
    %v2204 = vsub.f32 %v69, %v2203
    %v2205 = vand.u32 %v2204, 4294901760
    %2206 = vmatpush1.msra.mxu0 %v2205
    %v2207 = vand.u32 %v78, 4294901760
    %v2208 = vsub.f32 %v78, %v2207
    %v2209 = vand.u32 %v2208, 4294901760
    %2210 = vmatprep.subr.mxu0 %v2209
    %v2211 = vand.u32 %v77, 4294901760
    %v2212 = vsub.f32 %v77, %v2211
    %v2213 = vand.u32 %v2212, 4294901760
    %2214 = vmatpush1.msra.mxu0 %v2213
    %2215 = vmatprep.subr.mxu0 0.0
    %2216 = vmatpush1.msra.mxu0 0.0
    %2217 = vmatprep.subr.mxu0 0.0
    %2218 = vmatpush1.msra.mxu0 0.0
    %2219 = vmatprep.subr.mxu0 0.0
    %2220 = vmatpush1.msra.mxu0 0.0
    %2221 = vmatprep.subr.mxu0 0.0
    %2222 = vmatpush1.msra.mxu0 0.0
    %2223 = vmatprep.subr.mxu0 0.0
    %2224 = vmatpush1.msra.mxu0 0.0
    %2225 = vmatprep.subr.mxu0 0.0
    %2226 = vmatpush1.msra.mxu0 0.0
    %2227 = vmatprep.subr.mxu0 0.0
    %2228 = vmatpush1.msra.mxu0 0.0
    %2229 = vmatprep.subr.mxu0 0.0
    %2230 = vmatpush1.msra.mxu0 0.0
    %2231 = vmatprep.subr.mxu0 0.0
    %2232 = vmatpush1.msra.mxu0 0.0
    %2233 = vmatprep.subr.mxu0 0.0
    %2234 = vmatpush1.msra.mxu0 0.0
    %2235 = vmatprep.subr.mxu0 0.0
    %2236 = vmatpush1.msra.mxu0 0.0
    %2237 = vmatprep.subr.mxu0 0.0
    %2238 = vmatpush1.msra.mxu0 0.0
    %2239 = vmatprep.subr.mxu0 0.0
    %2240 = vmatpush1.msra.mxu0 0.0
    %2241 = vmatprep.subr.mxu0 0.0
    %2242 = vmatpush1.msra.mxu0 0.0
    %2243 = vmatprep.subr.mxu0 0.0
    %2244 = vmatpush1.msra.mxu0 0.0
    %2245 = vmatprep.subr.mxu0 0.0
    %2246 = vmatpush1.msra.mxu0 0.0
    %2247 = vmatprep.subr.mxu0 0.0
    %2248 = vmatpush1.msra.mxu0 0.0
    %2249 = vmatprep.subr.mxu0 0.0
    %2250 = vmatpush1.msra.mxu0 0.0
    %2251 = vmatprep.subr.mxu0 0.0
    %2252 = vmatpush1.msra.mxu0 0.0
    %2253 = vmatprep.subr.mxu0 0.0
    %2254 = vmatpush1.msra.mxu0 0.0
    %2255 = vmatprep.subr.mxu0 0.0
    %2256 = vmatpush1.msra.mxu0 0.0
    %2257 = vmatprep.subr.mxu0 0.0
    %2258 = vmatpush1.msra.mxu0 0.0
    %2259 = vmatprep.subr.mxu0 0.0
    %2260 = vmatpush1.msra.mxu0 0.0
    %2261 = vmatprep.subr.mxu0 0.0
    %2262 = vmatpush1.msra.mxu0 0.0
    %2263 = vmatprep.subr.mxu0 0.0
    %2264 = vmatpush1.msra.mxu0 0.0
    %2265 = vmatprep.subr.mxu0 0.0
    %2266 = vmatpush1.msra.mxu0 0.0
    %2267 = vmatprep.subr.mxu0 0.0
    %2268 = vmatpush1.msra.mxu0 0.0
    %2269 = vmatprep.mubr.f32.mxu0 0.0
    %v2270 = vand.u32 %v81, 4294901760
    %2271 = vmatmul.mubr.f32.gmra.mrb[0].mxu0 %v2270
    %v2272 = vpop.f32.mrb[0].mxu0
    %v2273 = vadd.f32 %v2171, %v2272
    %v2274 = vpop.f32.mrb[0].mxu0
    %v2275 = vadd.f32 %v2173, %v2274
    %2276 = vdwg.mxu0
    %v2277 = vand.u32 %v46, 4294901760
    %2278 = vmatprep.subr.mxu0 %v2277
    %v2279 = vand.u32 %v45, 4294901760
    %2280 = vmatpush1.msra.mxu0 %v2279
    %v2281 = vand.u32 %v54, 4294901760
    %2282 = vmatprep.subr.mxu0 %v2281
    %v2283 = vand.u32 %v53, 4294901760
    %2284 = vmatpush1.msra.mxu0 %v2283
    %v2285 = vand.u32 %v62, 4294901760
    %2286 = vmatprep.subr.mxu0 %v2285
    %v2287 = vand.u32 %v61, 4294901760
    %2288 = vmatpush1.msra.mxu0 %v2287
    %v2289 = vand.u32 %v70, 4294901760
    %2290 = vmatprep.subr.mxu0 %v2289
    %v2291 = vand.u32 %v69, 4294901760
    %2292 = vmatpush1.msra.mxu0 %v2291
    %v2293 = vand.u32 %v78, 4294901760
    %2294 = vmatprep.subr.mxu0 %v2293
    %v2295 = vand.u32 %v77, 4294901760
    %2296 = vmatpush1.msra.mxu0 %v2295
    %2297 = vmatprep.subr.mxu0 0.0
    %2298 = vmatpush1.msra.mxu0 0.0
    %2299 = vmatprep.subr.mxu0 0.0
    %2300 = vmatpush1.msra.mxu0 0.0
    %2301 = vmatprep.subr.mxu0 0.0
    %2302 = vmatpush1.msra.mxu0 0.0
    %2303 = vmatprep.subr.mxu0 0.0
    %2304 = vmatpush1.msra.mxu0 0.0
    %2305 = vmatprep.subr.mxu0 0.0
    %2306 = vmatpush1.msra.mxu0 0.0
    %2307 = vmatprep.subr.mxu0 0.0
    %2308 = vmatpush1.msra.mxu0 0.0
    %2309 = vmatprep.subr.mxu0 0.0
    %2310 = vmatpush1.msra.mxu0 0.0
    %2311 = vmatprep.subr.mxu0 0.0
    %2312 = vmatpush1.msra.mxu0 0.0
    %2313 = vmatprep.subr.mxu0 0.0
    %2314 = vmatpush1.msra.mxu0 0.0
    %2315 = vmatprep.subr.mxu0 0.0
    %2316 = vmatpush1.msra.mxu0 0.0
    %2317 = vmatprep.subr.mxu0 0.0
    %2318 = vmatpush1.msra.mxu0 0.0
    %2319 = vmatprep.subr.mxu0 0.0
    %2320 = vmatpush1.msra.mxu0 0.0
    %2321 = vmatprep.subr.mxu0 0.0
    %2322 = vmatpush1.msra.mxu0 0.0
    %2323 = vmatprep.subr.mxu0 0.0
    %2324 = vmatpush1.msra.mxu0 0.0
    %2325 = vmatprep.subr.mxu0 0.0
    %2326 = vmatpush1.msra.mxu0 0.0
    %2327 = vmatprep.subr.mxu0 0.0
    %2328 = vmatpush1.msra.mxu0 0.0
    %2329 = vmatprep.subr.mxu0 0.0
    %2330 = vmatpush1.msra.mxu0 0.0
    %2331 = vmatprep.subr.mxu0 0.0
    %2332 = vmatpush1.msra.mxu0 0.0
    %2333 = vmatprep.subr.mxu0 0.0
    %2334 = vmatpush1.msra.mxu0 0.0
    %2335 = vmatprep.subr.mxu0 0.0
    %2336 = vmatpush1.msra.mxu0 0.0
    %2337 = vmatprep.subr.mxu0 0.0
    %2338 = vmatpush1.msra.mxu0 0.0
    %2339 = vmatprep.subr.mxu0 0.0
    %2340 = vmatpush1.msra.mxu0 0.0
    %2341 = vmatprep.subr.mxu0 0.0
    %2342 = vmatpush1.msra.mxu0 0.0
    %2343 = vmatprep.subr.mxu0 0.0
    %2344 = vmatpush1.msra.mxu0 0.0
    %2345 = vmatprep.subr.mxu0 0.0
    %2346 = vmatpush1.msra.mxu0 0.0
    %2347 = vmatprep.subr.mxu0 0.0
    %2348 = vmatpush1.msra.mxu0 0.0
    %2349 = vmatprep.subr.mxu0 0.0
    %2350 = vmatpush1.msra.mxu0 0.0
    %2351 = vmatprep.mubr.f32.mxu0 0.0
    %v2352 = vand.u32 %v81, 4294901760
    %2353 = vmatmul.mubr.f32.gmra.mrb[0].mxu0 %v2352
    %v2354 = vpop.f32.mrb[0].mxu0
    %v2355 = vadd.f32 %v2273, %v2354
    %v2356 = vpop.f32.mrb[0].mxu0
    %v2357 = vadd.f32 %v2275, %v2356
    %2358 = vdwg.mxu0
    %v2367 = vcombine.low %v648, %v650
    %v2368 = vcombine.low %v1217, %v1219
    %v2370 = vunpack.c.l.s4 1983009808
    %v2371 = vunpack.c.0.s8 %v2370
    %v2372 = vlaneseq
    %v2373 = vshrl.u32 %v2372, 7
    %v2374 = vsub.s32 %v2371, %v2373
    %v2375 = vrot.slane %v2367, %v2374
    %v2377 = vunpack.c.l.s4 1983009808
    %v2378 = vunpack.c.0.s8 %v2377
    %v2379 = vlaneseq
    %v2380 = vshrl.u32 %v2379, 7
    %v2381 = vsub.s32 %v2378, %v2380
    %v2382 = vrot.slane %v2368, %v2381
    %v2383 = vcombine.low %v2375, %v2382
    %v2384 = vcombine.low %v1786, %v1788
    %v2385 = vcombine.low %v2355, %v2357
    %v2387 = vunpack.c.l.s4 1983009808
    %v2388 = vunpack.c.0.s8 %v2387
    %v2389 = vlaneseq
    %v2390 = vshrl.u32 %v2389, 7
    %v2391 = vsub.s32 %v2388, %v2390
    %v2392 = vrot.slane %v2384, %v2391
    %v2394 = vunpack.c.l.s4 1983009808
    %v2395 = vunpack.c.0.s8 %v2394
    %v2396 = vlaneseq
    %v2397 = vshrl.u32 %v2396, 7
    %v2398 = vsub.s32 %v2395, %v2397
    %v2399 = vrot.slane %v2385, %v2398
    %v2400 = vcombine.low %v2392, %v2399
    %2403 = vst [vmem:[#allocation7] sm:$0xff] %v2383
    %2404 = vst [vmem:[#allocation7 + $0x8] sm:$0xff] %v2400
    // Predicated region
    $region18: #{tpu_custom_call.1} parent=1 // pred_check
      _
    $region19: #{tpu_custom_call.1} parent=1 // pred_check_branch
      %2406 = sbr.rel (0) target = $region21
    $region20: #{tpu_custom_call.1} parent=1 // pred_region
      %s2408 = ssub.s32 256, 256
      %2409 = vsyncadd [#allocation4], %s2408
      %s2411 = sshll.u32 [#allocation7], 4
      %s2412 = int_to_ptr.vmem [resolvable:$true] %s2411
      %2414 = dma.vmem_to_hbm [thread:$0]  %s2412, 256, %s2, [#allocation4]
    $region21: #{tpu_custom_call.1} parent=1 // pred_fallthru
      _
    // Predicated region
    $region22: #{tpu_custom_call.1} parent=1 // pred_check
      _
    $region23: #{tpu_custom_call.1} parent=1 // pred_check_branch
      %2416 = sbr.rel (0) target = $region25
    $region24: #{tpu_custom_call.1} parent=1 // pred_region
      %2417 = dma.done [#allocation4], 256
    $region25: #{tpu_custom_call.1} parent=1 // pred_fallthru
      _
    %2418 = vsyncpa [#allocation3], 1
    %2419 = vsyncpa [#allocation6], 1
    %2420 = vsyncpa [#allocation4], 1

</llo_original>
